<compile_context>
chip_gen: v7x
topology: tpu7x:2x2x1
jax: 0.10.0
libtpu: 0.0.40
codegen_flags: <defaults>
</compile_context>

<pallas_src>
import numpy as np
import jax
import jax.numpy as jnp
from jax.experimental import pallas as pl
from jax.experimental.pallas import tpu as pltpu


# ----------------------------------------------------------------------------
# Glue: adaptive-avg-pool and bilinear-upsample factor matrices (PyTorch rules)
# ----------------------------------------------------------------------------
def adaptive_avg_pool_matrix(out_size: int, in_size: int) -> np.ndarray:
    """P[i, j] = weight of input pixel j in adaptive-avg-pool output bin i."""
    P = np.zeros((out_size, in_size), dtype=np.float64)
    for i in range(out_size):
        start = (i * in_size) // out_size
        end = -((-(i + 1) * in_size) // out_size)  # ceil((i+1)*in/out)
        P[i, start:end] = 1.0 / (end - start)
    return P


def bilinear_upsample_matrix(out_size: int, in_size: int) -> np.ndarray:
    """U[i, j] = bilinear weight (align_corners=False, PyTorch semantics)."""
    U = np.zeros((out_size, in_size), dtype=np.float64)
    scale = in_size / out_size
    for i in range(out_size):
        src = (i + 0.5) * scale - 0.5
        src = max(src, 0.0)
        i0 = min(int(np.floor(src)), in_size - 1)
        i1 = min(i0 + 1, in_size - 1)
        l1 = src - i0
        U[i, i0] += 1.0 - l1
        U[i, i1] += l1
    return U


def stage_spatial_matrix(size: int, H: int, W: int) -> np.ndarray:
    """Dense (HW, HW) upsample∘pool operator — used only by the JAX reference."""
    Mr = bilinear_upsample_matrix(H, size) @ adaptive_avg_pool_matrix(size, H)
    Mc = bilinear_upsample_matrix(W, size) @ adaptive_avg_pool_matrix(size, W)
    return np.kron(Mr, Mc).astype(np.float32)  # row-major flatten h*W + w


# ----------------------------------------------------------------------------
# Pallas kernel: whole batch in one step, low-rank spatial ops, fused 1x1 convs
# ----------------------------------------------------------------------------
def make_psp_kernel(n_stages: int):
    def psp_kernel(*refs):
        # refs layout:
        #   [0]                      x:    (B*C, HW)
        #   [1 .. S]                 Pt_s: (HW, r_s)   pool factor (transposed)
        #   [S+1 .. 2S]              Ut_s: (r_s, HW)   upsample factor (transposed)
        #   [2S+1]                   Wf:   (S+1, B*Cout, B*C) block-diag fused weights
        #   [2S+2]                   bias: (B*Cout, 1)
        #   [2S+3]                   out:  (B*Cout, HW)
        x_ref = refs[0]
        pt_refs = refs[1:1 + n_stages]
        ut_refs = refs[1 + n_stages:1 + 2 * n_stages]
        wf_ref = refs[1 + 2 * n_stages]
        b_ref = refs[2 + 2 * n_stages]
        o_ref = refs[3 + 2 * n_stages]

        x = x_ref[...]                                                   # (B*C, HW)

        # identity slot of the channel concat (the raw feats)
        acc = jnp.dot(wf_ref[n_stages], x, preferred_element_type=jnp.float32)

        # pyramid stages: adaptive pool -> fused (stage+bottleneck) 1x1 -> upsample
        for s in range(n_stages):                                        # static unroll
            pooled = jnp.dot(x, pt_refs[s][...],
                             preferred_element_type=jnp.float32)         # (B*C, r_s)
            mixed = jnp.dot(wf_ref[s], pooled,
                            preferred_element_type=jnp.float32)          # (B*Cout, r_s)
            acc = acc + jnp.dot(mixed, ut_refs[s][...],
                                preferred_element_type=jnp.float32)      # (B*Cout, HW)

        o_ref[...] = jnp.maximum(acc + b_ref[...], 0.0).astype(o_ref.dtype)

    return psp_kernel


def psp_module_forward(x_nchw, stage_weights, wb, bb, sizes):
    """x_nchw: (B, C, H, W) float32. Returns (B, Cout, H, W) — PSPModule.forward."""
    B, C, H, W = x_nchw.shape
    Cout = wb.shape[0]
    S = len(sizes)
    HW = H * W
    BC, BCout = B * C, B * Cout

    # ---- glue: layout + constant factor matrices (host-side, tiny) ----------
    # channel-major flatten: NCHW -> (B*C, HW) is a pure reshape (no transpose)
    x_flat = x_nchw.reshape(BC, HW)

    # low-rank factors of (bilinear upsample ∘ adaptive pool), per stage.
    # rank r = size^2, zero-padded up to a multiple of 8 (exact: padded rows of
    # P / padded rows of U^T are zero, so they contribute nothing).
    pt_list, ut_list = [], []
    for sz in sizes:
        r = sz * sz
        r_pad = max(8, ((r + 7) // 8) * 8)
        P = np.kron(adaptive_avg_pool_matrix(sz, H),
                    adaptive_avg_pool_matrix(sz, W))        # (r, HW)
        U = np.kron(bilinear_upsample_matrix(H, sz),
                    bilinear_upsample_matrix(W, sz))        # (HW, r)
        Pt = np.zeros((HW, r_pad), np.float32)
        Pt[:, :r] = P.T
        Ut = np.zeros((r_pad, HW), np.float32)
        Ut[:r, :] = U.T
        pt_list.append(jnp.asarray(Pt))
        ut_list.append(jnp.asarray(Ut))

    # fuse per-stage 1x1 conv into its bottleneck slot, lift to block-diagonal
    # over the folded batch axis:  Wf_s = kron(I_B, Wbc[s] @ Ws[s]).
    Wbc = wb.reshape(Cout, S + 1, C).transpose(1, 0, 2)                   # (S+1, Cout, C)
    eyeB = jnp.eye(B, dtype=jnp.float32)
    wf = jnp.stack(
        [jnp.kron(eyeB, Wbc[s] @ stage_weights[s]) for s in range(S)]
        + [jnp.kron(eyeB, Wbc[S])],
        axis=0,
    )                                                                     # (S+1, B*Cout, B*C)
    bias = jnp.tile(bb, B).reshape(BCout, 1)

    # ---- pallas_call: single grid step, everything resident in VMEM ---------
    in_specs = (
        [pl.BlockSpec((BC, HW), lambda i: (0, 0))]
        + [pl.BlockSpec(p.shape, lambda i: (0, 0)) for p in pt_list]
        + [pl.BlockSpec(u.shape, lambda i: (0, 0)) for u in ut_list]
        + [pl.BlockSpec((S + 1, BCout, BC), lambda i: (0, 0, 0)),
           pl.BlockSpec((BCout, 1), lambda i: (0, 0))]
    )

    out_flat = pl.pallas_call(
        make_psp_kernel(S),
        out_shape=jax.ShapeDtypeStruct((BCout, HW), jnp.float32),
        grid_spec=pltpu.PrefetchScalarGridSpec(
            num_scalar_prefetch=0,
            grid=(1,),
            in_specs=in_specs,
            out_specs=pl.BlockSpec((BCout, HW), lambda i: (0, 0)),
        ),
        compiler_params=pltpu.CompilerParams(
            dimension_semantics=("arbitrary",),
        ),
    )(x_flat, *pt_list, *ut_list, wf, bias)

    # (B*Cout, HW) -> NCHW is again a pure reshape.
    return out_flat.reshape(B, Cout, H, W)


# ----------------------------------------------------------------------------
# Pure-JAX reference: dense spatial operator, UNfused stage/bottleneck weights
# (independent of the kernel's factorization and weight fusion).
# ----------------------------------------------------------------------------
def psp_reference(x_nchw, stage_weights, wb, bb, sizes):
    B, C, H, W = x_nchw.shape
    Cout = wb.shape[0]
    S = len(sizes)
    HW = H * W
    xf = x_nchw.reshape(B, C, HW)
    Wbc = wb.reshape(Cout, S + 1, C).transpose(1, 0, 2)
    acc = jnp.einsum("oc,bcp->bop", Wbc[S], xf)
    for s, size in enumerate(sizes):
        Ks = jnp.asarray(stage_spatial_matrix(size, H, W))    # (HW, HW) dense
        y = jnp.einsum("bcq,pq->bcp", xf, Ks)                 # pool + upsample
        y = jnp.einsum("dc,bcp->bdp", stage_weights[s], y)    # stage 1x1 conv
        acc = acc + jnp.einsum("od,bdp->bop", Wbc[s], y)      # bottleneck slot
    acc = jnp.maximum(acc + bb[None, :, None], 0.0)
    return acc.reshape(B, Cout, H, W)


if __name__ == "__main__":
    # Small shapes: batch=2, features(C)=4, spatial=16x16, out_features=32.
    B, C, H, W = 2, 4, 16, 16
    Cout = 32
    sizes = (1, 2, 3, 6)

    key = jax.random.PRNGKey(0)
    k_x, k_w, k_wb, k_bb = jax.random.split(key, 4)

    x = jax.random.normal(k_x, (B, C, H, W), dtype=jnp.float32)

    # Parameter shapes follow the nn.Conv2d 1x1 kernels in PSPModule.__init__.
    stage_keys = jax.random.split(k_w, len(sizes))
    stage_weights = [
        0.1 * jax.random.normal(kk, (C, C), dtype=jnp.float32) for kk in stage_keys
    ]  # per-stage Conv2d(C, C, 1, bias=False)
    wb = 0.1 * jax.random.normal(k_wb, (Cout, C * (len(sizes) + 1)), dtype=jnp.float32)
    bb = 0.01 * jax.random.normal(k_bb, (Cout,), dtype=jnp.float32)

    out = jax.block_until_ready(psp_module_forward(x, stage_weights, wb, bb, sizes))
    ref = jax.block_until_ready(psp_reference(x, stage_weights, wb, bb, sizes))
    assert out.shape == (B, Cout, H, W), out.shape
    assert np.allclose(np.asarray(out), np.asarray(ref), atol=1e-4, rtol=1e-4)

    # Non-square spatial sanity check (H != W): exercises the kron ordering of
    # the pool/upsample factors against the independently-built dense operator.
    x2 = jax.random.normal(jax.random.PRNGKey(1), (1, C, 16, 8), dtype=jnp.float32)
    out2 = jax.block_until_ready(psp_module_forward(x2, stage_weights, wb, bb, sizes))
    ref2 = jax.block_until_ready(psp_reference(x2, stage_weights, wb, bb, sizes))
    assert np.allclose(np.asarray(out2), np.asarray(ref2), atol=1e-4, rtol=1e-4)

    print("KERNEL_OK")
</pallas_src>

<mosaic_0001>
module attributes {stable_mosaic.version = 11 : i64} {
  func.func @psp_kernel(%arg0: i32, %arg1: memref<8x256xf32, #tpu.memory_space<vmem>>, %arg2: memref<256x8xf32, #tpu.memory_space<vmem>>, %arg3: memref<256x8xf32, #tpu.memory_space<vmem>>, %arg4: memref<256x16xf32, #tpu.memory_space<vmem>>, %arg5: memref<256x40xf32, #tpu.memory_space<vmem>>, %arg6: memref<8x256xf32, #tpu.memory_space<vmem>>, %arg7: memref<8x256xf32, #tpu.memory_space<vmem>>, %arg8: memref<16x256xf32, #tpu.memory_space<vmem>>, %arg9: memref<40x256xf32, #tpu.memory_space<vmem>>, %arg10: memref<5x64x8xf32, #tpu.memory_space<vmem>>, %arg11: memref<64x1xf32, #tpu.memory_space<vmem>>, %arg12: memref<64x256xf32, #tpu.memory_space<vmem>>) attributes {dimension_semantics = [#tpu.dimension_semantics<arbitrary>], iteration_bounds = array<i64: 1>, scalar_prefetch = 0 : i64, scratch_operands = 0 : i64, tpu.core_type = #tpu.core_type<tc>, window_params = [{pipeline_mode = #tpu.pipeline_mode<synchronous>, transform_indices = @transform_0, window_bounds = array<i64: 8, 256>}, {pipeline_mode = #tpu.pipeline_mode<synchronous>, transform_indices = @transform_1, window_bounds = array<i64: 256, 8>}, {pipeline_mode = #tpu.pipeline_mode<synchronous>, transform_indices = @transform_2, window_bounds = array<i64: 256, 8>}, {pipeline_mode = #tpu.pipeline_mode<synchronous>, transform_indices = @transform_3, window_bounds = array<i64: 256, 16>}, {pipeline_mode = #tpu.pipeline_mode<synchronous>, transform_indices = @transform_4, window_bounds = array<i64: 256, 40>}, {pipeline_mode = #tpu.pipeline_mode<synchronous>, transform_indices = @transform_5, window_bounds = array<i64: 8, 256>}, {pipeline_mode = #tpu.pipeline_mode<synchronous>, transform_indices = @transform_6, window_bounds = array<i64: 8, 256>}, {pipeline_mode = #tpu.pipeline_mode<synchronous>, transform_indices = @transform_7, window_bounds = array<i64: 16, 256>}, {pipeline_mode = #tpu.pipeline_mode<synchronous>, transform_indices = @transform_8, window_bounds = array<i64: 40, 256>}, {pipeline_mode = #tpu.pipeline_mode<synchronous>, transform_indices = @transform_9, window_bounds = array<i64: 5, 64, 8>}, {pipeline_mode = #tpu.pipeline_mode<synchronous>, transform_indices = @transform_10, window_bounds = array<i64: 64, 1>}, {pipeline_mode = #tpu.pipeline_mode<synchronous>, transform_indices = @transform_11, window_bounds = array<i64: 64, 256>}]} {
    %c0 = arith.constant 0 : index
    %c0_0 = arith.constant 0 : index
    %0 = vector.load %arg1[%c0, %c0_0] : memref<8x256xf32, #tpu.memory_space<vmem>>, vector<8x256xf32>
    %c4 = arith.constant 4 : index
    %c0_1 = arith.constant 0 : index
    %c0_2 = arith.constant 0 : index
    %1 = vector.load %arg10[%c4, %c0_1, %c0_2] : memref<5x64x8xf32, #tpu.memory_space<vmem>>, vector<1x64x8xf32>
    %2 = vector.shape_cast %1 : vector<1x64x8xf32> to vector<64x8xf32>
    %cst = arith.constant dense<0.000000e+00> : vector<64x256xf32>
    %3 = tpu.matmul %2, %0, %cst {dimension_numbers = #tpu.dot_dimension_numbers<[1], [0], [0], [1], [0, 0, 1, 1], [], []>} : vector<64x8xf32>, vector<8x256xf32>, vector<64x256xf32> -> vector<64x256xf32>
    %c0_3 = arith.constant 0 : index
    %c0_4 = arith.constant 0 : index
    %4 = vector.load %arg2[%c0_3, %c0_4] : memref<256x8xf32, #tpu.memory_space<vmem>>, vector<256x8xf32>
    %cst_5 = arith.constant dense<0.000000e+00> : vector<8x8xf32>
    %5 = tpu.matmul %0, %4, %cst_5 {dimension_numbers = #tpu.dot_dimension_numbers<[1], [0], [0], [1], [0, 0, 1, 1], [], []>} : vector<8x256xf32>, vector<256x8xf32>, vector<8x8xf32> -> vector<8x8xf32>
    %c0_6 = arith.constant 0 : index
    %c0_7 = arith.constant 0 : index
    %c0_8 = arith.constant 0 : index
    %6 = vector.load %arg10[%c0_6, %c0_7, %c0_8] : memref<5x64x8xf32, #tpu.memory_space<vmem>>, vector<1x64x8xf32>
    %7 = vector.shape_cast %6 : vector<1x64x8xf32> to vector<64x8xf32>
    %cst_9 = arith.constant dense<0.000000e+00> : vector<64x8xf32>
    %8 = tpu.matmul %7, %5, %cst_9 {dimension_numbers = #tpu.dot_dimension_numbers<[1], [0], [0], [1], [0, 0, 1, 1], [], []>} : vector<64x8xf32>, vector<8x8xf32>, vector<64x8xf32> -> vector<64x8xf32>
    %c0_10 = arith.constant 0 : index
    %c0_11 = arith.constant 0 : index
    %9 = vector.load %arg6[%c0_10, %c0_11] : memref<8x256xf32, #tpu.memory_space<vmem>>, vector<8x256xf32>
    %cst_12 = arith.constant dense<0.000000e+00> : vector<64x256xf32>
    %10 = tpu.matmul %8, %9, %cst_12 {dimension_numbers = #tpu.dot_dimension_numbers<[1], [0], [0], [1], [0, 0, 1, 1], [], []>} : vector<64x8xf32>, vector<8x256xf32>, vector<64x256xf32> -> vector<64x256xf32>
    %11 = arith.addf %3, %10 : vector<64x256xf32>
    %c0_13 = arith.constant 0 : index
    %c0_14 = arith.constant 0 : index
    %12 = vector.load %arg3[%c0_13, %c0_14] : memref<256x8xf32, #tpu.memory_space<vmem>>, vector<256x8xf32>
    %cst_15 = arith.constant dense<0.000000e+00> : vector<8x8xf32>
    %13 = tpu.matmul %0, %12, %cst_15 {dimension_numbers = #tpu.dot_dimension_numbers<[1], [0], [0], [1], [0, 0, 1, 1], [], []>} : vector<8x256xf32>, vector<256x8xf32>, vector<8x8xf32> -> vector<8x8xf32>
    %c1 = arith.constant 1 : index
    %c0_16 = arith.constant 0 : index
    %c0_17 = arith.constant 0 : index
    %14 = vector.load %arg10[%c1, %c0_16, %c0_17] : memref<5x64x8xf32, #tpu.memory_space<vmem>>, vector<1x64x8xf32>
    %15 = vector.shape_cast %14 : vector<1x64x8xf32> to vector<64x8xf32>
    %cst_18 = arith.constant dense<0.000000e+00> : vector<64x8xf32>
    %16 = tpu.matmul %15, %13, %cst_18 {dimension_numbers = #tpu.dot_dimension_numbers<[1], [0], [0], [1], [0, 0, 1, 1], [], []>} : vector<64x8xf32>, vector<8x8xf32>, vector<64x8xf32> -> vector<64x8xf32>
    %c0_19 = arith.constant 0 : index
    %c0_20 = arith.constant 0 : index
    %17 = vector.load %arg7[%c0_19, %c0_20] : memref<8x256xf32, #tpu.memory_space<vmem>>, vector<8x256xf32>
    %cst_21 = arith.constant dense<0.000000e+00> : vector<64x256xf32>
    %18 = tpu.matmul %16, %17, %cst_21 {dimension_numbers = #tpu.dot_dimension_numbers<[1], [0], [0], [1], [0, 0, 1, 1], [], []>} : vector<64x8xf32>, vector<8x256xf32>, vector<64x256xf32> -> vector<64x256xf32>
    %19 = arith.addf %11, %18 : vector<64x256xf32>
    %c0_22 = arith.constant 0 : index
    %c0_23 = arith.constant 0 : index
    %20 = vector.load %arg4[%c0_22, %c0_23] : memref<256x16xf32, #tpu.memory_space<vmem>>, vector<256x16xf32>
    %cst_24 = arith.constant dense<0.000000e+00> : vector<8x16xf32>
    %21 = tpu.matmul %0, %20, %cst_24 {dimension_numbers = #tpu.dot_dimension_numbers<[1], [0], [0], [1], [0, 0, 1, 1], [], []>} : vector<8x256xf32>, vector<256x16xf32>, vector<8x16xf32> -> vector<8x16xf32>
    %c2 = arith.constant 2 : index
    %c0_25 = arith.constant 0 : index
    %c0_26 = arith.constant 0 : index
    %22 = vector.load %arg10[%c2, %c0_25, %c0_26] : memref<5x64x8xf32, #tpu.memory_space<vmem>>, vector<1x64x8xf32>
    %23 = vector.shape_cast %22 : vector<1x64x8xf32> to vector<64x8xf32>
    %cst_27 = arith.constant dense<0.000000e+00> : vector<64x16xf32>
    %24 = tpu.matmul %23, %21, %cst_27 {dimension_numbers = #tpu.dot_dimension_numbers<[1], [0], [0], [1], [0, 0, 1, 1], [], []>} : vector<64x8xf32>, vector<8x16xf32>, vector<64x16xf32> -> vector<64x16xf32>
    %c0_28 = arith.constant 0 : index
    %c0_29 = arith.constant 0 : index
    %25 = vector.load %arg8[%c0_28, %c0_29] : memref<16x256xf32, #tpu.memory_space<vmem>>, vector<16x256xf32>
    %cst_30 = arith.constant dense<0.000000e+00> : vector<64x256xf32>
    %26 = tpu.matmul %24, %25, %cst_30 {dimension_numbers = #tpu.dot_dimension_numbers<[1], [0], [0], [1], [0, 0, 1, 1], [], []>} : vector<64x16xf32>, vector<16x256xf32>, vector<64x256xf32> -> vector<64x256xf32>
    %27 = arith.addf %19, %26 : vector<64x256xf32>
    %c0_31 = arith.constant 0 : index
    %c0_32 = arith.constant 0 : index
    %28 = vector.load %arg5[%c0_31, %c0_32] : memref<256x40xf32, #tpu.memory_space<vmem>>, vector<256x40xf32>
    %cst_33 = arith.constant dense<0.000000e+00> : vector<8x40xf32>
    %29 = tpu.matmul %0, %28, %cst_33 {dimension_numbers = #tpu.dot_dimension_numbers<[1], [0], [0], [1], [0, 0, 1, 1], [], []>} : vector<8x256xf32>, vector<256x40xf32>, vector<8x40xf32> -> vector<8x40xf32>
    %c3 = arith.constant 3 : index
    %c0_34 = arith.constant 0 : index
    %c0_35 = arith.constant 0 : index
    %30 = vector.load %arg10[%c3, %c0_34, %c0_35] : memref<5x64x8xf32, #tpu.memory_space<vmem>>, vector<1x64x8xf32>
    %31 = vector.shape_cast %30 : vector<1x64x8xf32> to vector<64x8xf32>
    %cst_36 = arith.constant dense<0.000000e+00> : vector<64x40xf32>
    %32 = tpu.matmul %31, %29, %cst_36 {dimension_numbers = #tpu.dot_dimension_numbers<[1], [0], [0], [1], [0, 0, 1, 1], [], []>} : vector<64x8xf32>, vector<8x40xf32>, vector<64x40xf32> -> vector<64x40xf32>
    %c0_37 = arith.constant 0 : index
    %c0_38 = arith.constant 0 : index
    %33 = vector.load %arg9[%c0_37, %c0_38] : memref<40x256xf32, #tpu.memory_space<vmem>>, vector<40x256xf32>
    %cst_39 = arith.constant dense<0.000000e+00> : vector<64x256xf32>
    %34 = tpu.matmul %32, %33, %cst_39 {dimension_numbers = #tpu.dot_dimension_numbers<[1], [0], [0], [1], [0, 0, 1, 1], [], []>} : vector<64x40xf32>, vector<40x256xf32>, vector<64x256xf32> -> vector<64x256xf32>
    %35 = arith.addf %27, %34 : vector<64x256xf32>
    %c0_40 = arith.constant 0 : index
    %c0_41 = arith.constant 0 : index
    %36 = vector.load %arg11[%c0_40, %c0_41] : memref<64x1xf32, #tpu.memory_space<vmem>>, vector<64x1xf32>
    %37 = vector.broadcast %36 : vector<64x1xf32> to vector<64x256xf32>
    %38 = arith.addf %35, %37 : vector<64x256xf32>
    %cst_42 = arith.constant 0.000000e+00 : f32
    %39 = vector.broadcast %cst_42 : f32 to vector<64x256xf32>
    %40 = arith.maximumf %38, %39 : vector<64x256xf32>
    %c0_43 = arith.constant 0 : index
    %c0_44 = arith.constant 0 : index
    %41 = vector.load %arg12[%c0_43, %c0_44] : memref<64x256xf32, #tpu.memory_space<vmem>>, vector<64x256xf32>
    tpu.vector_store %arg12[%c0_43, %c0_44], %40 {strides = array<i32>} : memref<64x256xf32, #tpu.memory_space<vmem>>, vector<64x256xf32>,
    return
  }
  func.func @transform_0(%arg0: i32) -> (i32, i32) {
    %c0_i32 = arith.constant 0 : i32
    %c0_i32_0 = arith.constant 0 : i32
    %c0_i32_1 = arith.constant 0 : i32
    return %c0_i32, %c0_i32_0 : i32, i32
  }
  func.func @transform_1(%arg0: i32) -> (i32, i32) {
    %c0_i32 = arith.constant 0 : i32
    %c0_i32_0 = arith.constant 0 : i32
    %c0_i32_1 = arith.constant 0 : i32
    return %c0_i32, %c0_i32_0 : i32, i32
  }
  func.func @transform_2(%arg0: i32) -> (i32, i32) {
    %c0_i32 = arith.constant 0 : i32
    %c0_i32_0 = arith.constant 0 : i32
    %c0_i32_1 = arith.constant 0 : i32
    return %c0_i32, %c0_i32_0 : i32, i32
  }
  func.func @transform_3(%arg0: i32) -> (i32, i32) {
    %c0_i32 = arith.constant 0 : i32
    %c0_i32_0 = arith.constant 0 : i32
    %c0_i32_1 = arith.constant 0 : i32
    return %c0_i32, %c0_i32_0 : i32, i32
  }
  func.func @transform_4(%arg0: i32) -> (i32, i32) {
    %c0_i32 = arith.constant 0 : i32
    %c0_i32_0 = arith.constant 0 : i32
    %c0_i32_1 = arith.constant 0 : i32
    return %c0_i32, %c0_i32_0 : i32, i32
  }
  func.func @transform_5(%arg0: i32) -> (i32, i32) {
    %c0_i32 = arith.constant 0 : i32
    %c0_i32_0 = arith.constant 0 : i32
    %c0_i32_1 = arith.constant 0 : i32
    return %c0_i32, %c0_i32_0 : i32, i32
  }
  func.func @transform_6(%arg0: i32) -> (i32, i32) {
    %c0_i32 = arith.constant 0 : i32
    %c0_i32_0 = arith.constant 0 : i32
    %c0_i32_1 = arith.constant 0 : i32
    return %c0_i32, %c0_i32_0 : i32, i32
  }
  func.func @transform_7(%arg0: i32) -> (i32, i32) {
    %c0_i32 = arith.constant 0 : i32
    %c0_i32_0 = arith.constant 0 : i32
    %c0_i32_1 = arith.constant 0 : i32
    return %c0_i32, %c0_i32_0 : i32, i32
  }
  func.func @transform_8(%arg0: i32) -> (i32, i32) {
    %c0_i32 = arith.constant 0 : i32
    %c0_i32_0 = arith.constant 0 : i32
    %c0_i32_1 = arith.constant 0 : i32
    return %c0_i32, %c0_i32_0 : i32, i32
  }
  func.func @transform_9(%arg0: i32) -> (i32, i32, i32) {
    %c0_i32 = arith.constant 0 : i32
    %c0_i32_0 = arith.constant 0 : i32
    %c0_i32_1 = arith.constant 0 : i32
    %c0_i32_2 = arith.constant 0 : i32
    return %c0_i32, %c0_i32_0, %c0_i32_1 : i32, i32, i32
  }
  func.func @transform_10(%arg0: i32) -> (i32, i32) {
    %c0_i32 = arith.constant 0 : i32
    %c0_i32_0 = arith.constant 0 : i32
    %c0_i32_1 = arith.constant 0 : i32
    return %c0_i32, %c0_i32_0 : i32, i32
  }
  func.func @transform_11(%arg0: i32) -> (i32, i32) {
    %c0_i32 = arith.constant 0 : i32
    %c0_i32_0 = arith.constant 0 : i32
    %c0_i32_1 = arith.constant 0 : i32
    return %c0_i32, %c0_i32_0 : i32, i32
  }
}

</mosaic_0001>

<llo_original>
// kernel: tpu_custom_call.1
$region0: #{tpu_custom_call.1}
  #allocation0 [shape = 'u32[]', space=smem, size = 0x4, offset = 0x4, fixed_abs, tag = 'smem constant byte address 0x4 - core index']
  #allocation1 [shape = 'u32[144,128]{1,0:T(1,128)}', space=vmem, size = 0x12000, scoped, tag = 'internal scratch']
  %s0 = inlined_call_operand.vmem [shape: f32[8,256], index: 0, kind: input, shape index: {}]
  %s1 = inlined_call_operand.vmem [shape: f32[256,8], index: 1, kind: input, shape index: {}]
  %s2 = inlined_call_operand.vmem [shape: f32[256,8], index: 2, kind: input, shape index: {}]
  %s3 = inlined_call_operand.vmem [shape: f32[256,16], index: 3, kind: input, shape index: {}]
  %s4 = inlined_call_operand.vmem [shape: f32[256,40], index: 4, kind: input, shape index: {}]
  %s5 = inlined_call_operand.vmem [shape: f32[8,256], index: 5, kind: input, shape index: {}]
  %s6 = inlined_call_operand.vmem [shape: f32[8,256], index: 6, kind: input, shape index: {}]
  %s7 = inlined_call_operand.vmem [shape: f32[16,256], index: 7, kind: input, shape index: {}]
  %s8 = inlined_call_operand.vmem [shape: f32[40,256], index: 8, kind: input, shape index: {}]
  %s9 = inlined_call_operand.vmem [shape: f32[5,64,8], index: 9, kind: input, shape index: {}]
  %s10 = inlined_call_operand.vmem [shape: f32[64,1], index: 10, kind: input, shape index: {}]
  %s11 = inlined_call_operand.hbm [shape: f32[64,256], index: 11, kind: output, shape index: {}]
  %s12 = sld [smem:[#allocation0]]
  $region54: #{tpu_custom_call.1} parent=0
    _
  %s14 = ssub.s32 1, %s12
  %s15 = scalar_select 0, %s14, %s12
  $region1: #{tpu_custom_call.1} parent=0
    #allocation2 [shape = 'u8[65536]{0}', space=vmem, size = 0x10000, scoped, tag = 'output window, operand 0, single buffered']
    #allocation3 [shape = 's32[1]{0}', space=sflag, size = 0x4, scoped, tag = 'scoped memory for tpu_custom_call.1']
    %16 = vsyncpa [#allocation3], 0
    // Predicated region
    $region2: #{tpu_custom_call.1} parent=1 // pred_check
      _
    $region3: #{tpu_custom_call.1} parent=1 // pred_check_branch
      %18 = sbr.rel (0) target = $region5
    $region4: #{tpu_custom_call.1} parent=1 // pred_region
      _
    $region5: #{tpu_custom_call.1} parent=1 // pred_fallthru
      _
    // Predicated region
    $region6: #{tpu_custom_call.1} parent=1 // pred_check
      _
    $region7: #{tpu_custom_call.1} parent=1 // pred_check_branch
      %20 = sbr.rel (0) target = $region9
    $region8: #{tpu_custom_call.1} parent=1 // pred_region
      _
    $region9: #{tpu_custom_call.1} parent=1 // pred_fallthru
      _
    // Predicated region
    $region10: #{tpu_custom_call.1} parent=1 // pred_check
      _
    $region11: #{tpu_custom_call.1} parent=1 // pred_check_branch
      %22 = sbr.rel (0) target = $region13
    $region12: #{tpu_custom_call.1} parent=1 // pred_region
      _
    $region13: #{tpu_custom_call.1} parent=1 // pred_fallthru
      _
    // Predicated region
    $region14: #{tpu_custom_call.1} parent=1 // pred_check
      _
    $region15: #{tpu_custom_call.1} parent=1 // pred_check_branch
      %24 = sbr.rel (0) target = $region17
    $region16: #{tpu_custom_call.1} parent=1 // pred_region
      _
    $region17: #{tpu_custom_call.1} parent=1 // pred_fallthru
      _
    // Predicated region
    $region18: #{tpu_custom_call.1} parent=1 // pred_check
      _
    $region19: #{tpu_custom_call.1} parent=1 // pred_check_branch
      %26 = sbr.rel (0) target = $region21
    $region20: #{tpu_custom_call.1} parent=1 // pred_region
      _
    $region21: #{tpu_custom_call.1} parent=1 // pred_fallthru
      _
    // Predicated region
    $region22: #{tpu_custom_call.1} parent=1 // pred_check
      _
    $region23: #{tpu_custom_call.1} parent=1 // pred_check_branch
      %28 = sbr.rel (0) target = $region25
    $region24: #{tpu_custom_call.1} parent=1 // pred_region
      _
    $region25: #{tpu_custom_call.1} parent=1 // pred_fallthru
      _
    // Predicated region
    $region26: #{tpu_custom_call.1} parent=1 // pred_check
      _
    $region27: #{tpu_custom_call.1} parent=1 // pred_check_branch
      %30 = sbr.rel (0) target = $region29
    $region28: #{tpu_custom_call.1} parent=1 // pred_region
      _
    $region29: #{tpu_custom_call.1} parent=1 // pred_fallthru
      _
    // Predicated region
    $region30: #{tpu_custom_call.1} parent=1 // pred_check
      _
    $region31: #{tpu_custom_call.1} parent=1 // pred_check_branch
      %32 = sbr.rel (0) target = $region33
    $region32: #{tpu_custom_call.1} parent=1 // pred_region
      _
    $region33: #{tpu_custom_call.1} parent=1 // pred_fallthru
      _
    // Predicated region
    $region34: #{tpu_custom_call.1} parent=1 // pred_check
      _
    $region35: #{tpu_custom_call.1} parent=1 // pred_check_branch
      %34 = sbr.rel (0) target = $region37
    $region36: #{tpu_custom_call.1} parent=1 // pred_region
      _
    $region37: #{tpu_custom_call.1} parent=1 // pred_fallthru
      _
    // Predicated region
    $region38: #{tpu_custom_call.1} parent=1 // pred_check
      _
    $region39: #{tpu_custom_call.1} parent=1 // pred_check_branch
      %36 = sbr.rel (0) target = $region41
    $region40: #{tpu_custom_call.1} parent=1 // pred_region
      _
    $region41: #{tpu_custom_call.1} parent=1 // pred_fallthru
      _
    // Predicated region
    $region42: #{tpu_custom_call.1} parent=1 // pred_check
      _
    $region43: #{tpu_custom_call.1} parent=1 // pred_check_branch
      %38 = sbr.rel (0) target = $region45
    $region44: #{tpu_custom_call.1} parent=1 // pred_region
      _
    $region45: #{tpu_custom_call.1} parent=1 // pred_fallthru
      _
    %v39 = vld [vmem:[%s0] sm:$0xff]
    %v40 = vld [vmem:[%s0 + $0x8] sm:$0xff]
    %s41 = scalar_lea.vmem %s9, 256
    %v42 = vld [vmem:[%s41] sm:$0xff]
    %v43 = vld [vmem:[%s41 + $0x8] sm:$0xff]
    %v44 = vld [vmem:[%s41 + $0x10] sm:$0xff]
    %v45 = vld [vmem:[%s41 + $0x18] sm:$0xff]
    %v46 = vld [vmem:[%s41 + $0x20] sm:$0xff]
    %v47 = vld [vmem:[%s41 + $0x28] sm:$0xff]
    %v48 = vld [vmem:[%s41 + $0x30] sm:$0xff]
    %v49 = vld [vmem:[%s41 + $0x38] sm:$0xff]
    %v50 = vld [vmem:[%s1] sm:$0xff]
    %v51 = vld [vmem:[%s1 + $0x8] sm:$0xff]
    %v52 = vld [vmem:[%s1 + $0x10] sm:$0xff]
    %v53 = vld [vmem:[%s1 + $0x18] sm:$0xff]
    %v54 = vld [vmem:[%s1 + $0x20] sm:$0xff]
    %v55 = vld [vmem:[%s1 + $0x28] sm:$0xff]
    %v56 = vld [vmem:[%s1 + $0x30] sm:$0xff]
    %v57 = vld [vmem:[%s1 + $0x38] sm:$0xff]
    %v58 = vld [vmem:[%s1 + $0x40] sm:$0xff]
    %v59 = vld [vmem:[%s1 + $0x48] sm:$0xff]
    %v60 = vld [vmem:[%s1 + $0x50] sm:$0xff]
    %v61 = vld [vmem:[%s1 + $0x58] sm:$0xff]
    %v62 = vld [vmem:[%s1 + $0x60] sm:$0xff]
    %v63 = vld [vmem:[%s1 + $0x68] sm:$0xff]
    %v64 = vld [vmem:[%s1 + $0x70] sm:$0xff]
    %v65 = vld [vmem:[%s1 + $0x78] sm:$0xff]
    %v66 = vld [vmem:[%s1 + $0x80] sm:$0xff]
    %v67 = vld [vmem:[%s1 + $0x88] sm:$0xff]
    %v68 = vld [vmem:[%s1 + $0x90] sm:$0xff]
    %v69 = vld [vmem:[%s1 + $0x98] sm:$0xff]
    %v70 = vld [vmem:[%s1 + $0xa0] sm:$0xff]
    %v71 = vld [vmem:[%s1 + $0xa8] sm:$0xff]
    %v72 = vld [vmem:[%s1 + $0xb0] sm:$0xff]
    %v73 = vld [vmem:[%s1 + $0xb8] sm:$0xff]
    %v74 = vld [vmem:[%s1 + $0xc0] sm:$0xff]
    %v75 = vld [vmem:[%s1 + $0xc8] sm:$0xff]
    %v76 = vld [vmem:[%s1 + $0xd0] sm:$0xff]
    %v77 = vld [vmem:[%s1 + $0xd8] sm:$0xff]
    %v78 = vld [vmem:[%s1 + $0xe0] sm:$0xff]
    %v79 = vld [vmem:[%s1 + $0xe8] sm:$0xff]
    %v80 = vld [vmem:[%s1 + $0xf0] sm:$0xff]
    %v81 = vld [vmem:[%s1 + $0xf8] sm:$0xff]
    %82 = vmatprep.subr.mxu0 0.0
    %83 = vmatpush1.msra.mxu0 %v50
    %84 = vmatprep.subr.mxu0 0.0
    %85 = vmatpush1.msra.mxu0 %v51
    %86 = vmatprep.subr.mxu0 0.0
    %87 = vmatpush1.msra.mxu0 %v52
    %88 = vmatprep.subr.mxu0 0.0
    %89 = vmatpush1.msra.mxu0 %v53
    %90 = vmatprep.subr.mxu0 0.0
    %91 = vmatpush1.msra.mxu0 %v54
    %92 = vmatprep.subr.mxu0 0.0
    %93 = vmatpush1.msra.mxu0 %v55
    %94 = vmatprep.subr.mxu0 0.0
    %95 = vmatpush1.msra.mxu0 %v56
    %96 = vmatprep.subr.mxu0 0.0
    %97 = vmatpush1.msra.mxu0 %v57
    %98 = vmatprep.subr.mxu0 0.0
    %99 = vmatpush1.msra.mxu0 %v58
    %100 = vmatprep.subr.mxu0 0.0
    %101 = vmatpush1.msra.mxu0 %v59
    %102 = vmatprep.subr.mxu0 0.0
    %103 = vmatpush1.msra.mxu0 %v60
    %104 = vmatprep.subr.mxu0 0.0
    %105 = vmatpush1.msra.mxu0 %v61
    %106 = vmatprep.subr.mxu0 0.0
    %107 = vmatpush1.msra.mxu0 %v62
    %108 = vmatprep.subr.mxu0 0.0
    %109 = vmatpush1.msra.mxu0 %v63
    %110 = vmatprep.subr.mxu0 0.0
    %111 = vmatpush1.msra.mxu0 %v64
    %112 = vmatprep.subr.mxu0 0.0
    %113 = vmatpush1.msra.mxu0 %v65
    %114 = vmatprep.subr.mxu0 0.0
    %115 = vmatpush1.msra.mxu0 %v66
    %116 = vmatprep.subr.mxu0 0.0
    %117 = vmatpush1.msra.mxu0 %v67
    %118 = vmatprep.subr.mxu0 0.0
    %119 = vmatpush1.msra.mxu0 %v68
    %120 = vmatprep.subr.mxu0 0.0
    %121 = vmatpush1.msra.mxu0 %v69
    %122 = vmatprep.subr.mxu0 0.0
    %123 = vmatpush1.msra.mxu0 %v70
    %124 = vmatprep.subr.mxu0 0.0
    %125 = vmatpush1.msra.mxu0 %v71
    %126 = vmatprep.subr.mxu0 0.0
    %127 = vmatpush1.msra.mxu0 %v72
    %128 = vmatprep.subr.mxu0 0.0
    %129 = vmatpush1.msra.mxu0 %v73
    %130 = vmatprep.subr.mxu0 0.0
    %131 = vmatpush1.msra.mxu0 %v74
    %132 = vmatprep.subr.mxu0 0.0
    %133 = vmatpush1.msra.mxu0 %v75
    %134 = vmatprep.subr.mxu0 0.0
    %135 = vmatpush1.msra.mxu0 %v76
    %136 = vmatprep.subr.mxu0 0.0
    %137 = vmatpush1.msra.mxu0 %v77
    %138 = vmatprep.subr.mxu0 0.0
    %139 = vmatpush1.msra.mxu0 %v78
    %140 = vmatprep.subr.mxu0 0.0
    %141 = vmatpush1.msra.mxu0 %v79
    %142 = vmatprep.subr.mxu0 0.0
    %143 = vmatpush1.msra.mxu0 %v80
    %144 = vmatprep.subr.mxu0 0.0
    %145 = vmatpush1.msra.mxu0 %v81
    %146 = vmatprep.mubr.f32.mxu0 %v40
    %147 = vmatmul.mubr.f32.gmra.mrb[0].mxu0 %v39
    %v148 = vpop.f32.mrb[0].mxu0
    %v149 = vadd.f32 0.0, %v148
    %v150 = vpop.f32.mrb[0].mxu0
    %151 = vdwg.mxu0
    %v152 = vld [vmem:[%s9] sm:$0xff]
    %v153 = vld [vmem:[%s9 + $0x8] sm:$0xff]
    %v154 = vld [vmem:[%s9 + $0x10] sm:$0xff]
    %v155 = vld [vmem:[%s9 + $0x18] sm:$0xff]
    %v156 = vld [vmem:[%s9 + $0x20] sm:$0xff]
    %v157 = vld [vmem:[%s9 + $0x28] sm:$0xff]
    %v158 = vld [vmem:[%s9 + $0x30] sm:$0xff]
    %v159 = vld [vmem:[%s9 + $0x38] sm:$0xff]
    %vm160 = vcmask 64512
    %v162 = vsel %vm160, %v152, 0
    %v165 = vsel %vm160, %v153, 0
    %v168 = vsel %vm160, %v154, 0
    %v171 = vsel %vm160, %v155, 0
    %v174 = vsel %vm160, %v156, 0
    %v177 = vsel %vm160, %v157, 0
    %v180 = vsel %vm160, %v158, 0
    %v183 = vsel %vm160, %v159, 0
    %185 = vmatprep.subr.mxu0 0.0
    %186 = vmatpush1.msra.mxu0 %v149
    %187 = vmatprep.subr.mxu0 0.0
    %188 = vmatpush1.msra.mxu0 0.0
    %189 = vmatprep.subr.mxu0 0.0
    %190 = vmatpush1.msra.mxu0 0.0
    %191 = vmatprep.subr.mxu0 0.0
    %192 = vmatpush1.msra.mxu0 0.0
    %193 = vmatprep.subr.mxu0 0.0
    %194 = vmatpush1.msra.mxu0 0.0
    %195 = vmatprep.subr.mxu0 0.0
    %196 = vmatpush1.msra.mxu0 0.0
    %197 = vmatprep.subr.mxu0 0.0
    %198 = vmatpush1.msra.mxu0 0.0
    %199 = vmatprep.subr.mxu0 0.0
    %200 = vmatpush1.msra.mxu0 0.0
    %201 = vmatprep.subr.mxu0 0.0
    %202 = vmatpush1.msra.mxu0 0.0
    %203 = vmatprep.subr.mxu0 0.0
    %204 = vmatpush1.msra.mxu0 0.0
    %205 = vmatprep.subr.mxu0 0.0
    %206 = vmatpush1.msra.mxu0 0.0
    %207 = vmatprep.subr.mxu0 0.0
    %208 = vmatpush1.msra.mxu0 0.0
    %209 = vmatprep.subr.mxu0 0.0
    %210 = vmatpush1.msra.mxu0 0.0
    %211 = vmatprep.subr.mxu0 0.0
    %212 = vmatpush1.msra.mxu0 0.0
    %213 = vmatprep.subr.mxu0 0.0
    %214 = vmatpush1.msra.mxu0 0.0
    %215 = vmatprep.subr.mxu0 0.0
    %216 = vmatpush1.msra.mxu0 0.0
    %217 = vmatprep.subr.mxu0 0.0
    %218 = vmatpush1.msra.mxu0 0.0
    %219 = vmatprep.subr.mxu0 0.0
    %220 = vmatpush1.msra.mxu0 0.0
    %221 = vmatprep.subr.mxu0 0.0
    %222 = vmatpush1.msra.mxu0 0.0
    %223 = vmatprep.subr.mxu0 0.0
    %224 = vmatpush1.msra.mxu0 0.0
    %225 = vmatprep.subr.mxu0 0.0
    %226 = vmatpush1.msra.mxu0 0.0
    %227 = vmatprep.subr.mxu0 0.0
    %228 = vmatpush1.msra.mxu0 0.0
    %229 = vmatprep.subr.mxu0 0.0
    %230 = vmatpush1.msra.mxu0 0.0
    %231 = vmatprep.subr.mxu0 0.0
    %232 = vmatpush1.msra.mxu0 0.0
    %233 = vmatprep.subr.mxu0 0.0
    %234 = vmatpush1.msra.mxu0 0.0
    %235 = vmatprep.subr.mxu0 0.0
    %236 = vmatpush1.msra.mxu0 0.0
    %237 = vmatprep.subr.mxu0 0.0
    %238 = vmatpush1.msra.mxu0 0.0
    %239 = vmatprep.subr.mxu0 0.0
    %240 = vmatpush1.msra.mxu0 0.0
    %241 = vmatprep.subr.mxu0 0.0
    %242 = vmatpush1.msra.mxu0 0.0
    %243 = vmatprep.subr.mxu0 0.0
    %244 = vmatpush1.msra.mxu0 0.0
    %245 = vmatprep.subr.mxu0 0.0
    %246 = vmatpush1.msra.mxu0 0.0
    %247 = vmatprep.subr.mxu0 0.0
    %248 = vmatpush1.msra.mxu0 0.0
    %249 = vmatprep.mubr.f32.mxu0 0.0
    %250 = vmatmul.mubr.f32.gmra.mrb[0].mxu0 %v162
    %v251 = vpop.f32.mrb[0].mxu0
    %v252 = vadd.f32 0.0, %v251
    %v253 = vpop.f32.mrb[0].mxu0
    %254 = vmatprep.mubr.f32.mxu0 0.0
    %255 = vmatmul.mubr.f32.gmra.mrb[0].mxu0 %v165
    %v256 = vpop.f32.mrb[0].mxu0
    %v257 = vadd.f32 0.0, %v256
    %v258 = vpop.f32.mrb[0].mxu0
    %259 = vmatprep.mubr.f32.mxu0 0.0
    %260 = vmatmul.mubr.f32.gmra.mrb[0].mxu0 %v168
    %v261 = vpop.f32.mrb[0].mxu0
    %v262 = vadd.f32 0.0, %v261
    %v263 = vpop.f32.mrb[0].mxu0
    %264 = vmatprep.mubr.f32.mxu0 0.0
    %265 = vmatmul.mubr.f32.gmra.mrb[0].mxu0 %v171
    %v266 = vpop.f32.mrb[0].mxu0
    %v267 = vadd.f32 0.0, %v266
    %v268 = vpop.f32.mrb[0].mxu0
    %269 = vmatprep.mubr.f32.mxu0 0.0
    %270 = vmatmul.mubr.f32.gmra.mrb[0].mxu0 %v174
    %v271 = vpop.f32.mrb[0].mxu0
    %v272 = vadd.f32 0.0, %v271
    %v273 = vpop.f32.mrb[0].mxu0
    %274 = vmatprep.mubr.f32.mxu0 0.0
    %275 = vmatmul.mubr.f32.gmra.mrb[0].mxu0 %v177
    %v276 = vpop.f32.mrb[0].mxu0
    %v277 = vadd.f32 0.0, %v276
    %v278 = vpop.f32.mrb[0].mxu0
    %279 = vmatprep.mubr.f32.mxu0 0.0
    %280 = vmatmul.mubr.f32.gmra.mrb[0].mxu0 %v180
    %v281 = vpop.f32.mrb[0].mxu0
    %v282 = vadd.f32 0.0, %v281
    %v283 = vpop.f32.mrb[0].mxu0
    %284 = vmatprep.mubr.f32.mxu0 0.0
    %285 = vmatmul.mubr.f32.gmra.mrb[0].mxu0 %v183
    %v286 = vpop.f32.mrb[0].mxu0
    %v287 = vadd.f32 0.0, %v286
    %v288 = vpop.f32.mrb[0].mxu0
    %289 = vdwg.mxu0
    %v290 = vld [vmem:[%s5] sm:$0xff]
    %v291 = vld [vmem:[%s5 + $0x8] sm:$0xff]
    %v293 = vsel %vm160, %v252, 0
    %v296 = vsel %vm160, %v257, 0
    %v299 = vsel %vm160, %v262, 0
    %v302 = vsel %vm160, %v267, 0
    %v305 = vsel %vm160, %v272, 0
    %v308 = vsel %vm160, %v277, 0
    %v311 = vsel %vm160, %v282, 0
    %v314 = vsel %vm160, %v287, 0
    %316 = vmatprep.subr.mxu0 %v291
    %317 = vmatpush1.msra.mxu0 %v290
    %318 = vmatprep.subr.mxu0 0.0
    %319 = vmatpush1.msra.mxu0 0.0
    %320 = vmatprep.subr.mxu0 0.0
    %321 = vmatpush1.msra.mxu0 0.0
    %322 = vmatprep.subr.mxu0 0.0
    %323 = vmatpush1.msra.mxu0 0.0
    %324 = vmatprep.subr.mxu0 0.0
    %325 = vmatpush1.msra.mxu0 0.0
    %326 = vmatprep.subr.mxu0 0.0
    %327 = vmatpush1.msra.mxu0 0.0
    %328 = vmatprep.subr.mxu0 0.0
    %329 = vmatpush1.msra.mxu0 0.0
    %330 = vmatprep.subr.mxu0 0.0
    %331 = vmatpush1.msra.mxu0 0.0
    %332 = vmatprep.subr.mxu0 0.0
    %333 = vmatpush1.msra.mxu0 0.0
    %334 = vmatprep.subr.mxu0 0.0
    %335 = vmatpush1.msra.mxu0 0.0
    %336 = vmatprep.subr.mxu0 0.0
    %337 = vmatpush1.msra.mxu0 0.0
    %338 = vmatprep.subr.mxu0 0.0
    %339 = vmatpush1.msra.mxu0 0.0
    %340 = vmatprep.subr.mxu0 0.0
    %341 = vmatpush1.msra.mxu0 0.0
    %342 = vmatprep.subr.mxu0 0.0
    %343 = vmatpush1.msra.mxu0 0.0
    %344 = vmatprep.subr.mxu0 0.0
    %345 = vmatpush1.msra.mxu0 0.0
    %346 = vmatprep.subr.mxu0 0.0
    %347 = vmatpush1.msra.mxu0 0.0
    %348 = vmatprep.subr.mxu0 0.0
    %349 = vmatpush1.msra.mxu0 0.0
    %350 = vmatprep.subr.mxu0 0.0
    %351 = vmatpush1.msra.mxu0 0.0
    %352 = vmatprep.subr.mxu0 0.0
    %353 = vmatpush1.msra.mxu0 0.0
    %354 = vmatprep.subr.mxu0 0.0
    %355 = vmatpush1.msra.mxu0 0.0
    %356 = vmatprep.subr.mxu0 0.0
    %357 = vmatpush1.msra.mxu0 0.0
    %358 = vmatprep.subr.mxu0 0.0
    %359 = vmatpush1.msra.mxu0 0.0
    %360 = vmatprep.subr.mxu0 0.0
    %361 = vmatpush1.msra.mxu0 0.0
    %362 = vmatprep.subr.mxu0 0.0
    %363 = vmatpush1.msra.mxu0 0.0
    %364 = vmatprep.subr.mxu0 0.0
    %365 = vmatpush1.msra.mxu0 0.0
    %366 = vmatprep.subr.mxu0 0.0
    %367 = vmatpush1.msra.mxu0 0.0
    %368 = vmatprep.subr.mxu0 0.0
    %369 = vmatpush1.msra.mxu0 0.0
    %370 = vmatprep.subr.mxu0 0.0
    %371 = vmatpush1.msra.mxu0 0.0
    %372 = vmatprep.subr.mxu0 0.0
    %373 = vmatpush1.msra.mxu0 0.0
    %374 = vmatprep.subr.mxu0 0.0
    %375 = vmatpush1.msra.mxu0 0.0
    %376 = vmatprep.subr.mxu0 0.0
    %377 = vmatpush1.msra.mxu0 0.0
    %378 = vmatprep.subr.mxu0 0.0
    %379 = vmatpush1.msra.mxu0 0.0
    %380 = vmatprep.mubr.f32.mxu0 0.0
    %381 = vmatmul.mubr.f32.gmra.mrb[0].mxu0 %v293
    %v382 = vpop.f32.mrb[0].mxu0
    %v383 = vadd.f32 0.0, %v382
    %v384 = vpop.f32.mrb[0].mxu0
    %v385 = vadd.f32 0.0, %v384
    %386 = vmatprep.mubr.f32.mxu0 0.0
    %387 = vmatmul.mubr.f32.gmra.mrb[0].mxu0 %v296
    %v388 = vpop.f32.mrb[0].mxu0
    %v389 = vadd.f32 0.0, %v388
    %v390 = vpop.f32.mrb[0].mxu0
    %v391 = vadd.f32 0.0, %v390
    %392 = vmatprep.mubr.f32.mxu0 0.0
    %393 = vmatmul.mubr.f32.gmra.mrb[0].mxu0 %v299
    %v394 = vpop.f32.mrb[0].mxu0
    %v395 = vadd.f32 0.0, %v394
    %v396 = vpop.f32.mrb[0].mxu0
    %v397 = vadd.f32 0.0, %v396
    %398 = vmatprep.mubr.f32.mxu0 0.0
    %399 = vmatmul.mubr.f32.gmra.mrb[0].mxu0 %v302
    %v400 = vpop.f32.mrb[0].mxu0
    %v401 = vadd.f32 0.0, %v400
    %v402 = vpop.f32.mrb[0].mxu0
    %v403 = vadd.f32 0.0, %v402
    %404 = vmatprep.mubr.f32.mxu0 0.0
    %405 = vmatmul.mubr.f32.gmra.mrb[0].mxu0 %v305
    %v406 = vpop.f32.mrb[0].mxu0
    %v407 = vadd.f32 0.0, %v406
    %v408 = vpop.f32.mrb[0].mxu0
    %v409 = vadd.f32 0.0, %v408
    %410 = vmatprep.mubr.f32.mxu0 0.0
    %411 = vmatmul.mubr.f32.gmra.mrb[0].mxu0 %v308
    %v412 = vpop.f32.mrb[0].mxu0
    %v413 = vadd.f32 0.0, %v412
    %v414 = vpop.f32.mrb[0].mxu0
    %v415 = vadd.f32 0.0, %v414
    %416 = vmatprep.mubr.f32.mxu0 0.0
    %417 = vmatmul.mubr.f32.gmra.mrb[0].mxu0 %v311
    %v418 = vpop.f32.mrb[0].mxu0
    %v419 = vadd.f32 0.0, %v418
    %v420 = vpop.f32.mrb[0].mxu0
    %v421 = vadd.f32 0.0, %v420
    %422 = vmatprep.mubr.f32.mxu0 0.0
    %423 = vmatmul.mubr.f32.gmra.mrb[0].mxu0 %v314
    %v424 = vpop.f32.mrb[0].mxu0
    %v425 = vadd.f32 0.0, %v424
    %v426 = vpop.f32.mrb[0].mxu0
    %v427 = vadd.f32 0.0, %v426
    %428 = vdwg.mxu0
    %v430 = vsel %vm160, %v42, 0
    %v433 = vsel %vm160, %v43, 0
    %v436 = vsel %vm160, %v44, 0
    %v439 = vsel %vm160, %v45, 0
    %v442 = vsel %vm160, %v46, 0
    %v445 = vsel %vm160, %v47, 0
    %v448 = vsel %vm160, %v48, 0
    %v451 = vsel %vm160, %v49, 0
    %453 = vmatprep.subr.mxu0 %v40
    %454 = vmatpush1.msra.mxu0 %v39
    %455 = vmatprep.subr.mxu0 0.0
    %456 = vmatpush1.msra.mxu0 0.0
    %457 = vmatprep.subr.mxu0 0.0
    %458 = vmatpush1.msra.mxu0 0.0
    %459 = vmatprep.subr.mxu0 0.0
    %460 = vmatpush1.msra.mxu0 0.0
    %461 = vmatprep.subr.mxu0 0.0
    %462 = vmatpush1.msra.mxu0 0.0
    %463 = vmatprep.subr.mxu0 0.0
    %464 = vmatpush1.msra.mxu0 0.0
    %465 = vmatprep.subr.mxu0 0.0
    %466 = vmatpush1.msra.mxu0 0.0
    %467 = vmatprep.subr.mxu0 0.0
    %468 = vmatpush1.msra.mxu0 0.0
    %469 = vmatprep.subr.mxu0 0.0
    %470 = vmatpush1.msra.mxu0 0.0
    %471 = vmatprep.subr.mxu0 0.0
    %472 = vmatpush1.msra.mxu0 0.0
    %473 = vmatprep.subr.mxu0 0.0
    %474 = vmatpush1.msra.mxu0 0.0
    %475 = vmatprep.subr.mxu0 0.0
    %476 = vmatpush1.msra.mxu0 0.0
    %477 = vmatprep.subr.mxu0 0.0
    %478 = vmatpush1.msra.mxu0 0.0
    %479 = vmatprep.subr.mxu0 0.0
    %480 = vmatpush1.msra.mxu0 0.0
    %481 = vmatprep.subr.mxu0 0.0
    %482 = vmatpush1.msra.mxu0 0.0
    %483 = vmatprep.subr.mxu0 0.0
    %484 = vmatpush1.msra.mxu0 0.0
    %485 = vmatprep.subr.mxu0 0.0
    %486 = vmatpush1.msra.mxu0 0.0
    %487 = vmatprep.subr.mxu0 0.0
    %488 = vmatpush1.msra.mxu0 0.0
    %489 = vmatprep.subr.mxu0 0.0
    %490 = vmatpush1.msra.mxu0 0.0
    %491 = vmatprep.subr.mxu0 0.0
    %492 = vmatpush1.msra.mxu0 0.0
    %493 = vmatprep.subr.mxu0 0.0
    %494 = vmatpush1.msra.mxu0 0.0
    %495 = vmatprep.subr.mxu0 0.0
    %496 = vmatpush1.msra.mxu0 0.0
    %497 = vmatprep.subr.mxu0 0.0
    %498 = vmatpush1.msra.mxu0 0.0
    %499 = vmatprep.subr.mxu0 0.0
    %500 = vmatpush1.msra.mxu0 0.0
    %501 = vmatprep.subr.mxu0 0.0
    %502 = vmatpush1.msra.mxu0 0.0
    %503 = vmatprep.subr.mxu0 0.0
    %504 = vmatpush1.msra.mxu0 0.0
    %505 = vmatprep.subr.mxu0 0.0
    %506 = vmatpush1.msra.mxu0 0.0
    %507 = vmatprep.subr.mxu0 0.0
    %508 = vmatpush1.msra.mxu0 0.0
    %509 = vmatprep.subr.mxu0 0.0
    %510 = vmatpush1.msra.mxu0 0.0
    %511 = vmatprep.subr.mxu0 0.0
    %512 = vmatpush1.msra.mxu0 0.0
    %513 = vmatprep.subr.mxu0 0.0
    %514 = vmatpush1.msra.mxu0 0.0
    %515 = vmatprep.subr.mxu0 0.0
    %516 = vmatpush1.msra.mxu0 0.0
    %517 = vmatprep.mubr.f32.mxu0 0.0
    %518 = vmatmul.mubr.f32.gmra.mrb[0].mxu0 %v430
    %v519 = vpop.f32.mrb[0].mxu0
    %v520 = vadd.f32 %v383, %v519
    %v521 = vpop.f32.mrb[0].mxu0
    %v522 = vadd.f32 %v385, %v521
    %523 = vmatprep.mubr.f32.mxu0 0.0
    %524 = vmatmul.mubr.f32.gmra.mrb[0].mxu0 %v433
    %v525 = vpop.f32.mrb[0].mxu0
    %v526 = vadd.f32 %v389, %v525
    %v527 = vpop.f32.mrb[0].mxu0
    %v528 = vadd.f32 %v391, %v527
    %529 = vmatprep.mubr.f32.mxu0 0.0
    %530 = vmatmul.mubr.f32.gmra.mrb[0].mxu0 %v436
    %v531 = vpop.f32.mrb[0].mxu0
    %v532 = vadd.f32 %v395, %v531
    %v533 = vpop.f32.mrb[0].mxu0
    %v534 = vadd.f32 %v397, %v533
    %535 = vmatprep.mubr.f32.mxu0 0.0
    %536 = vmatmul.mubr.f32.gmra.mrb[0].mxu0 %v439
    %v537 = vpop.f32.mrb[0].mxu0
    %v538 = vadd.f32 %v401, %v537
    %v539 = vpop.f32.mrb[0].mxu0
    %v540 = vadd.f32 %v403, %v539
    %541 = vmatprep.mubr.f32.mxu0 0.0
    %542 = vmatmul.mubr.f32.gmra.mrb[0].mxu0 %v442
    %v543 = vpop.f32.mrb[0].mxu0
    %v544 = vadd.f32 %v407, %v543
    %v545 = vpop.f32.mrb[0].mxu0
    %v546 = vadd.f32 %v409, %v545
    %547 = vmatprep.mubr.f32.mxu0 0.0
    %548 = vmatmul.mubr.f32.gmra.mrb[0].mxu0 %v445
    %v549 = vpop.f32.mrb[0].mxu0
    %v550 = vadd.f32 %v413, %v549
    %v551 = vpop.f32.mrb[0].mxu0
    %v552 = vadd.f32 %v415, %v551
    %553 = vmatprep.mubr.f32.mxu0 0.0
    %554 = vmatmul.mubr.f32.gmra.mrb[0].mxu0 %v448
    %v555 = vpop.f32.mrb[0].mxu0
    %v556 = vadd.f32 %v419, %v555
    %v557 = vpop.f32.mrb[0].mxu0
    %v558 = vadd.f32 %v421, %v557
    %559 = vmatprep.mubr.f32.mxu0 0.0
    %560 = vmatmul.mubr.f32.gmra.mrb[0].mxu0 %v451
    %v561 = vpop.f32.mrb[0].mxu0
    %v562 = vadd.f32 %v425, %v561
    %v563 = vpop.f32.mrb[0].mxu0
    %v564 = vadd.f32 %v427, %v563
    %565 = vdwg.mxu0
    %v566 = vld [vmem:[%s2] sm:$0xff]
    %v567 = vld [vmem:[%s2 + $0x8] sm:$0xff]
    %v568 = vld [vmem:[%s2 + $0x10] sm:$0xff]
    %v569 = vld [vmem:[%s2 + $0x18] sm:$0xff]
    %v570 = vld [vmem:[%s2 + $0x20] sm:$0xff]
    %v571 = vld [vmem:[%s2 + $0x28] sm:$0xff]
    %v572 = vld [vmem:[%s2 + $0x30] sm:$0xff]
    %v573 = vld [vmem:[%s2 + $0x38] sm:$0xff]
    %v574 = vld [vmem:[%s2 + $0x40] sm:$0xff]
    %v575 = vld [vmem:[%s2 + $0x48] sm:$0xff]
    %v576 = vld [vmem:[%s2 + $0x50] sm:$0xff]
    %v577 = vld [vmem:[%s2 + $0x58] sm:$0xff]
    %v578 = vld [vmem:[%s2 + $0x60] sm:$0xff]
    %v579 = vld [vmem:[%s2 + $0x68] sm:$0xff]
    %v580 = vld [vmem:[%s2 + $0x70] sm:$0xff]
    %v581 = vld [vmem:[%s2 + $0x78] sm:$0xff]
    %v582 = vld [vmem:[%s2 + $0x80] sm:$0xff]
    %v583 = vld [vmem:[%s2 + $0x88] sm:$0xff]
    %v584 = vld [vmem:[%s2 + $0x90] sm:$0xff]
    %v585 = vld [vmem:[%s2 + $0x98] sm:$0xff]
    %v586 = vld [vmem:[%s2 + $0xa0] sm:$0xff]
    %v587 = vld [vmem:[%s2 + $0xa8] sm:$0xff]
    %v588 = vld [vmem:[%s2 + $0xb0] sm:$0xff]
    %v589 = vld [vmem:[%s2 + $0xb8] sm:$0xff]
    %v590 = vld [vmem:[%s2 + $0xc0] sm:$0xff]
    %v591 = vld [vmem:[%s2 + $0xc8] sm:$0xff]
    %v592 = vld [vmem:[%s2 + $0xd0] sm:$0xff]
    %v593 = vld [vmem:[%s2 + $0xd8] sm:$0xff]
    %v594 = vld [vmem:[%s2 + $0xe0] sm:$0xff]
    %v595 = vld [vmem:[%s2 + $0xe8] sm:$0xff]
    %v596 = vld [vmem:[%s2 + $0xf0] sm:$0xff]
    %v597 = vld [vmem:[%s2 + $0xf8] sm:$0xff]
    %598 = vmatprep.subr.mxu0 0.0
    %599 = vmatpush1.msra.mxu0 %v566
    %600 = vmatprep.subr.mxu0 0.0
    %601 = vmatpush1.msra.mxu0 %v567
    %602 = vmatprep.subr.mxu0 0.0
    %603 = vmatpush1.msra.mxu0 %v568
    %604 = vmatprep.subr.mxu0 0.0
    %605 = vmatpush1.msra.mxu0 %v569
    %606 = vmatprep.subr.mxu0 0.0
    %607 = vmatpush1.msra.mxu0 %v570
    %608 = vmatprep.subr.mxu0 0.0
    %609 = vmatpush1.msra.mxu0 %v571
    %610 = vmatprep.subr.mxu0 0.0
    %611 = vmatpush1.msra.mxu0 %v572
    %612 = vmatprep.subr.mxu0 0.0
    %613 = vmatpush1.msra.mxu0 %v573
    %614 = vmatprep.subr.mxu0 0.0
    %615 = vmatpush1.msra.mxu0 %v574
    %616 = vmatprep.subr.mxu0 0.0
    %617 = vmatpush1.msra.mxu0 %v575
    %618 = vmatprep.subr.mxu0 0.0
    %619 = vmatpush1.msra.mxu0 %v576
    %620 = vmatprep.subr.mxu0 0.0
    %621 = vmatpush1.msra.mxu0 %v577
    %622 = vmatprep.subr.mxu0 0.0
    %623 = vmatpush1.msra.mxu0 %v578
    %624 = vmatprep.subr.mxu0 0.0
    %625 = vmatpush1.msra.mxu0 %v579
    %626 = vmatprep.subr.mxu0 0.0
    %627 = vmatpush1.msra.mxu0 %v580
    %628 = vmatprep.subr.mxu0 0.0
    %629 = vmatpush1.msra.mxu0 %v581
    %630 = vmatprep.subr.mxu0 0.0
    %631 = vmatpush1.msra.mxu0 %v582
    %632 = vmatprep.subr.mxu0 0.0
    %633 = vmatpush1.msra.mxu0 %v583
    %634 = vmatprep.subr.mxu0 0.0
    %635 = vmatpush1.msra.mxu0 %v584
    %636 = vmatprep.subr.mxu0 0.0
    %637 = vmatpush1.msra.mxu0 %v585
    %638 = vmatprep.subr.mxu0 0.0
    %639 = vmatpush1.msra.mxu0 %v586
    %640 = vmatprep.subr.mxu0 0.0
    %641 = vmatpush1.msra.mxu0 %v587
    %642 = vmatprep.subr.mxu0 0.0
    %643 = vmatpush1.msra.mxu0 %v588
    %644 = vmatprep.subr.mxu0 0.0
    %645 = vmatpush1.msra.mxu0 %v589
    %646 = vmatprep.subr.mxu0 0.0
    %647 = vmatpush1.msra.mxu0 %v590
    %648 = vmatprep.subr.mxu0 0.0
    %649 = vmatpush1.msra.mxu0 %v591
    %650 = vmatprep.subr.mxu0 0.0
    %651 = vmatpush1.msra.mxu0 %v592
    %652 = vmatprep.subr.mxu0 0.0
    %653 = vmatpush1.msra.mxu0 %v593
    %654 = vmatprep.subr.mxu0 0.0
    %655 = vmatpush1.msra.mxu0 %v594
    %656 = vmatprep.subr.mxu0 0.0
    %657 = vmatpush1.msra.mxu0 %v595
    %658 = vmatprep.subr.mxu0 0.0
    %659 = vmatpush1.msra.mxu0 %v596
    %660 = vmatprep.subr.mxu0 0.0
    %661 = vmatpush1.msra.mxu0 %v597
    %662 = vmatprep.mubr.f32.mxu0 %v40
    %663 = vmatmul.mubr.f32.gmra.mrb[0].mxu0 %v39
    %v664 = vpop.f32.mrb[0].mxu0
    %v665 = vadd.f32 0.0, %v664
    %v666 = vpop.f32.mrb[0].mxu0
    %667 = vdwg.mxu0
    %s668 = scalar_lea.vmem %s9, 64
    %v669 = vld [vmem:[%s668] sm:$0xff]
    %v670 = vld [vmem:[%s668 + $0x8] sm:$0xff]
    %v671 = vld [vmem:[%s668 + $0x10] sm:$0xff]
    %v672 = vld [vmem:[%s668 + $0x18] sm:$0xff]
    %v673 = vld [vmem:[%s668 + $0x20] sm:$0xff]
    %v674 = vld [vmem:[%s668 + $0x28] sm:$0xff]
    %v675 = vld [vmem:[%s668 + $0x30] sm:$0xff]
    %v676 = vld [vmem:[%s668 + $0x38] sm:$0xff]
    %v678 = vsel %vm160, %v669, 0
    %v681 = vsel %vm160, %v670, 0
    %v684 = vsel %vm160, %v671, 0
    %v687 = vsel %vm160, %v672, 0
    %v690 = vsel %vm160, %v673, 0
    %v693 = vsel %vm160, %v674, 0
    %v696 = vsel %vm160, %v675, 0
    %v699 = vsel %vm160, %v676, 0
    %701 = vmatprep.subr.mxu0 0.0
    %702 = vmatpush1.msra.mxu0 %v665
    %703 = vmatprep.subr.mxu0 0.0
    %704 = vmatpush1.msra.mxu0 0.0
    %705 = vmatprep.subr.mxu0 0.0
    %706 = vmatpush1.msra.mxu0 0.0
    %707 = vmatprep.subr.mxu0 0.0
    %708 = vmatpush1.msra.mxu0 0.0
    %709 = vmatprep.subr.mxu0 0.0
    %710 = vmatpush1.msra.mxu0 0.0
    %711 = vmatprep.subr.mxu0 0.0
    %712 = vmatpush1.msra.mxu0 0.0
    %713 = vmatprep.subr.mxu0 0.0
    %714 = vmatpush1.msra.mxu0 0.0
    %715 = vmatprep.subr.mxu0 0.0
    %716 = vmatpush1.msra.mxu0 0.0
    %717 = vmatprep.subr.mxu0 0.0
    %718 = vmatpush1.msra.mxu0 0.0
    %719 = vmatprep.subr.mxu0 0.0
    %720 = vmatpush1.msra.mxu0 0.0
    %721 = vmatprep.subr.mxu0 0.0
    %722 = vmatpush1.msra.mxu0 0.0
    %723 = vmatprep.subr.mxu0 0.0
    %724 = vmatpush1.msra.mxu0 0.0
    %725 = vmatprep.subr.mxu0 0.0
    %726 = vmatpush1.msra.mxu0 0.0
    %727 = vmatprep.subr.mxu0 0.0
    %728 = vmatpush1.msra.mxu0 0.0
    %729 = vmatprep.subr.mxu0 0.0
    %730 = vmatpush1.msra.mxu0 0.0
    %731 = vmatprep.subr.mxu0 0.0
    %732 = vmatpush1.msra.mxu0 0.0
    %733 = vmatprep.subr.mxu0 0.0
    %734 = vmatpush1.msra.mxu0 0.0
    %735 = vmatprep.subr.mxu0 0.0
    %736 = vmatpush1.msra.mxu0 0.0
    %737 = vmatprep.subr.mxu0 0.0
    %738 = vmatpush1.msra.mxu0 0.0
    %739 = vmatprep.subr.mxu0 0.0
    %740 = vmatpush1.msra.mxu0 0.0
    %741 = vmatprep.subr.mxu0 0.0
    %742 = vmatpush1.msra.mxu0 0.0
    %743 = vmatprep.subr.mxu0 0.0
    %744 = vmatpush1.msra.mxu0 0.0
    %745 = vmatprep.subr.mxu0 0.0
    %746 = vmatpush1.msra.mxu0 0.0
    %747 = vmatprep.subr.mxu0 0.0
    %748 = vmatpush1.msra.mxu0 0.0
    %749 = vmatprep.subr.mxu0 0.0
    %750 = vmatpush1.msra.mxu0 0.0
    %751 = vmatprep.subr.mxu0 0.0
    %752 = vmatpush1.msra.mxu0 0.0
    %753 = vmatprep.subr.mxu0 0.0
    %754 = vmatpush1.msra.mxu0 0.0
    %755 = vmatprep.subr.mxu0 0.0
    %756 = vmatpush1.msra.mxu0 0.0
    %757 = vmatprep.subr.mxu0 0.0
    %758 = vmatpush1.msra.mxu0 0.0
    %759 = vmatprep.subr.mxu0 0.0
    %760 = vmatpush1.msra.mxu0 0.0
    %761 = vmatprep.subr.mxu0 0.0
    %762 = vmatpush1.msra.mxu0 0.0
    %763 = vmatprep.subr.mxu0 0.0
    %764 = vmatpush1.msra.mxu0 0.0
    %765 = vmatprep.mubr.f32.mxu0 0.0
    %766 = vmatmul.mubr.f32.gmra.mrb[0].mxu0 %v678
    %v767 = vpop.f32.mrb[0].mxu0
    %v768 = vadd.f32 0.0, %v767
    %v769 = vpop.f32.mrb[0].mxu0
    %770 = vmatprep.mubr.f32.mxu0 0.0
    %771 = vmatmul.mubr.f32.gmra.mrb[0].mxu0 %v681
    %v772 = vpop.f32.mrb[0].mxu0
    %v773 = vadd.f32 0.0, %v772
    %v774 = vpop.f32.mrb[0].mxu0
    %775 = vmatprep.mubr.f32.mxu0 0.0
    %776 = vmatmul.mubr.f32.gmra.mrb[0].mxu0 %v684
    %v777 = vpop.f32.mrb[0].mxu0
    %v778 = vadd.f32 0.0, %v777
    %v779 = vpop.f32.mrb[0].mxu0
    %780 = vmatprep.mubr.f32.mxu0 0.0
    %781 = vmatmul.mubr.f32.gmra.mrb[0].mxu0 %v687
    %v782 = vpop.f32.mrb[0].mxu0
    %v783 = vadd.f32 0.0, %v782
    %v784 = vpop.f32.mrb[0].mxu0
    %785 = vmatprep.mubr.f32.mxu0 0.0
    %786 = vmatmul.mubr.f32.gmra.mrb[0].mxu0 %v690
    %v787 = vpop.f32.mrb[0].mxu0
    %v788 = vadd.f32 0.0, %v787
    %v789 = vpop.f32.mrb[0].mxu0
    %790 = vmatprep.mubr.f32.mxu0 0.0
    %791 = vmatmul.mubr.f32.gmra.mrb[0].mxu0 %v693
    %v792 = vpop.f32.mrb[0].mxu0
    %v793 = vadd.f32 0.0, %v792
    %v794 = vpop.f32.mrb[0].mxu0
    %795 = vmatprep.mubr.f32.mxu0 0.0
    %796 = vmatmul.mubr.f32.gmra.mrb[0].mxu0 %v696
    %v797 = vpop.f32.mrb[0].mxu0
    %v798 = vadd.f32 0.0, %v797
    %v799 = vpop.f32.mrb[0].mxu0
    %800 = vmatprep.mubr.f32.mxu0 0.0
    %801 = vmatmul.mubr.f32.gmra.mrb[0].mxu0 %v699
    %v802 = vpop.f32.mrb[0].mxu0
    %v803 = vadd.f32 0.0, %v802
    %v804 = vpop.f32.mrb[0].mxu0
    %805 = vdwg.mxu0
    %v806 = vld [vmem:[%s6] sm:$0xff]
    %v807 = vld [vmem:[%s6 + $0x8] sm:$0xff]
    %v809 = vsel %vm160, %v768, 0
    %v812 = vsel %vm160, %v773, 0
    %v815 = vsel %vm160, %v778, 0
    %v818 = vsel %vm160, %v783, 0
    %v821 = vsel %vm160, %v788, 0
    %v824 = vsel %vm160, %v793, 0
    %v827 = vsel %vm160, %v798, 0
    %v830 = vsel %vm160, %v803, 0
    %832 = vmatprep.subr.mxu0 %v807
    %833 = vmatpush1.msra.mxu0 %v806
    %834 = vmatprep.subr.mxu0 0.0
    %835 = vmatpush1.msra.mxu0 0.0
    %836 = vmatprep.subr.mxu0 0.0
    %837 = vmatpush1.msra.mxu0 0.0
    %838 = vmatprep.subr.mxu0 0.0
    %839 = vmatpush1.msra.mxu0 0.0
    %840 = vmatprep.subr.mxu0 0.0
    %841 = vmatpush1.msra.mxu0 0.0
    %842 = vmatprep.subr.mxu0 0.0
    %843 = vmatpush1.msra.mxu0 0.0
    %844 = vmatprep.subr.mxu0 0.0
    %845 = vmatpush1.msra.mxu0 0.0
    %846 = vmatprep.subr.mxu0 0.0
    %847 = vmatpush1.msra.mxu0 0.0
    %848 = vmatprep.subr.mxu0 0.0
    %849 = vmatpush1.msra.mxu0 0.0
    %850 = vmatprep.subr.mxu0 0.0
    %851 = vmatpush1.msra.mxu0 0.0
    %852 = vmatprep.subr.mxu0 0.0
    %853 = vmatpush1.msra.mxu0 0.0
    %854 = vmatprep.subr.mxu0 0.0
    %855 = vmatpush1.msra.mxu0 0.0
    %856 = vmatprep.subr.mxu0 0.0
    %857 = vmatpush1.msra.mxu0 0.0
    %858 = vmatprep.subr.mxu0 0.0
    %859 = vmatpush1.msra.mxu0 0.0
    %860 = vmatprep.subr.mxu0 0.0
    %861 = vmatpush1.msra.mxu0 0.0
    %862 = vmatprep.subr.mxu0 0.0
    %863 = vmatpush1.msra.mxu0 0.0
    %864 = vmatprep.subr.mxu0 0.0
    %865 = vmatpush1.msra.mxu0 0.0
    %866 = vmatprep.subr.mxu0 0.0
    %867 = vmatpush1.msra.mxu0 0.0
    %868 = vmatprep.subr.mxu0 0.0
    %869 = vmatpush1.msra.mxu0 0.0
    %870 = vmatprep.subr.mxu0 0.0
    %871 = vmatpush1.msra.mxu0 0.0
    %872 = vmatprep.subr.mxu0 0.0
    %873 = vmatpush1.msra.mxu0 0.0
    %874 = vmatprep.subr.mxu0 0.0
    %875 = vmatpush1.msra.mxu0 0.0
    %876 = vmatprep.subr.mxu0 0.0
    %877 = vmatpush1.msra.mxu0 0.0
    %878 = vmatprep.subr.mxu0 0.0
    %879 = vmatpush1.msra.mxu0 0.0
    %880 = vmatprep.subr.mxu0 0.0
    %881 = vmatpush1.msra.mxu0 0.0
    %882 = vmatprep.subr.mxu0 0.0
    %883 = vmatpush1.msra.mxu0 0.0
    %884 = vmatprep.subr.mxu0 0.0
    %885 = vmatpush1.msra.mxu0 0.0
    %886 = vmatprep.subr.mxu0 0.0
    %887 = vmatpush1.msra.mxu0 0.0
    %888 = vmatprep.subr.mxu0 0.0
    %889 = vmatpush1.msra.mxu0 0.0
    %890 = vmatprep.subr.mxu0 0.0
    %891 = vmatpush1.msra.mxu0 0.0
    %892 = vmatprep.subr.mxu0 0.0
    %893 = vmatpush1.msra.mxu0 0.0
    %894 = vmatprep.subr.mxu0 0.0
    %895 = vmatpush1.msra.mxu0 0.0
    %896 = vmatprep.mubr.f32.mxu0 0.0
    %897 = vmatmul.mubr.f32.gmra.mrb[0].mxu0 %v809
    %v898 = vpop.f32.mrb[0].mxu0
    %v899 = vadd.f32 0.0, %v898
    %v900 = vpop.f32.mrb[0].mxu0
    %v901 = vadd.f32 0.0, %v900
    %902 = vmatprep.mubr.f32.mxu0 0.0
    %903 = vmatmul.mubr.f32.gmra.mrb[0].mxu0 %v812
    %v904 = vpop.f32.mrb[0].mxu0
    %v905 = vadd.f32 0.0, %v904
    %v906 = vpop.f32.mrb[0].mxu0
    %v907 = vadd.f32 0.0, %v906
    %908 = vmatprep.mubr.f32.mxu0 0.0
    %909 = vmatmul.mubr.f32.gmra.mrb[0].mxu0 %v815
    %v910 = vpop.f32.mrb[0].mxu0
    %v911 = vadd.f32 0.0, %v910
    %v912 = vpop.f32.mrb[0].mxu0
    %v913 = vadd.f32 0.0, %v912
    %914 = vmatprep.mubr.f32.mxu0 0.0
    %915 = vmatmul.mubr.f32.gmra.mrb[0].mxu0 %v818
    %v916 = vpop.f32.mrb[0].mxu0
    %v917 = vadd.f32 0.0, %v916
    %v918 = vpop.f32.mrb[0].mxu0
    %v919 = vadd.f32 0.0, %v918
    %920 = vmatprep.mubr.f32.mxu0 0.0
    %921 = vmatmul.mubr.f32.gmra.mrb[0].mxu0 %v821
    %v922 = vpop.f32.mrb[0].mxu0
    %v923 = vadd.f32 0.0, %v922
    %v924 = vpop.f32.mrb[0].mxu0
    %v925 = vadd.f32 0.0, %v924
    %926 = vmatprep.mubr.f32.mxu0 0.0
    %927 = vmatmul.mubr.f32.gmra.mrb[0].mxu0 %v824
    %v928 = vpop.f32.mrb[0].mxu0
    %v929 = vadd.f32 0.0, %v928
    %v930 = vpop.f32.mrb[0].mxu0
    %v931 = vadd.f32 0.0, %v930
    %932 = vmatprep.mubr.f32.mxu0 0.0
    %933 = vmatmul.mubr.f32.gmra.mrb[0].mxu0 %v827
    %v934 = vpop.f32.mrb[0].mxu0
    %v935 = vadd.f32 0.0, %v934
    %v936 = vpop.f32.mrb[0].mxu0
    %v937 = vadd.f32 0.0, %v936
    %938 = vmatprep.mubr.f32.mxu0 0.0
    %939 = vmatmul.mubr.f32.gmra.mrb[0].mxu0 %v830
    %v940 = vpop.f32.mrb[0].mxu0
    %v941 = vadd.f32 0.0, %v940
    %v942 = vpop.f32.mrb[0].mxu0
    %v943 = vadd.f32 0.0, %v942
    %944 = vdwg.mxu0
    %v945 = vadd.f32 %v520, %v899
    %v946 = vadd.f32 %v522, %v901
    %v947 = vadd.f32 %v526, %v905
    %v948 = vadd.f32 %v528, %v907
    %v949 = vadd.f32 %v532, %v911
    %v950 = vadd.f32 %v534, %v913
    %v951 = vadd.f32 %v538, %v917
    %v952 = vadd.f32 %v540, %v919
    %v953 = vadd.f32 %v544, %v923
    %v954 = vadd.f32 %v546, %v925
    %v955 = vadd.f32 %v550, %v929
    %v956 = vadd.f32 %v552, %v931
    %v957 = vadd.f32 %v556, %v935
    %v958 = vadd.f32 %v558, %v937
    %v959 = vadd.f32 %v562, %v941
    %v960 = vadd.f32 %v564, %v943
    %v961 = vld [vmem:[%s3] sm:$0xff]
    %v962 = vld [vmem:[%s3 + $0x8] sm:$0xff]
    %v963 = vld [vmem:[%s3 + $0x10] sm:$0xff]
    %v964 = vld [vmem:[%s3 + $0x18] sm:$0xff]
    %v965 = vld [vmem:[%s3 + $0x20] sm:$0xff]
    %v966 = vld [vmem:[%s3 + $0x28] sm:$0xff]
    %v967 = vld [vmem:[%s3 + $0x30] sm:$0xff]
    %v968 = vld [vmem:[%s3 + $0x38] sm:$0xff]
    %v969 = vld [vmem:[%s3 + $0x40] sm:$0xff]
    %v970 = vld [vmem:[%s3 + $0x48] sm:$0xff]
    %v971 = vld [vmem:[%s3 + $0x50] sm:$0xff]
    %v972 = vld [vmem:[%s3 + $0x58] sm:$0xff]
    %v973 = vld [vmem:[%s3 + $0x60] sm:$0xff]
    %v974 = vld [vmem:[%s3 + $0x68] sm:$0xff]
    %v975 = vld [vmem:[%s3 + $0x70] sm:$0xff]
    %v976 = vld [vmem:[%s3 + $0x78] sm:$0xff]
    %v977 = vld [vmem:[%s3 + $0x80] sm:$0xff]
    %v978 = vld [vmem:[%s3 + $0x88] sm:$0xff]
    %v979 = vld [vmem:[%s3 + $0x90] sm:$0xff]
    %v980 = vld [vmem:[%s3 + $0x98] sm:$0xff]
    %v981 = vld [vmem:[%s3 + $0xa0] sm:$0xff]
    %v982 = vld [vmem:[%s3 + $0xa8] sm:$0xff]
    %v983 = vld [vmem:[%s3 + $0xb0] sm:$0xff]
    %v984 = vld [vmem:[%s3 + $0xb8] sm:$0xff]
    %v985 = vld [vmem:[%s3 + $0xc0] sm:$0xff]
    %v986 = vld [vmem:[%s3 + $0xc8] sm:$0xff]
    %v987 = vld [vmem:[%s3 + $0xd0] sm:$0xff]
    %v988 = vld [vmem:[%s3 + $0xd8] sm:$0xff]
    %v989 = vld [vmem:[%s3 + $0xe0] sm:$0xff]
    %v990 = vld [vmem:[%s3 + $0xe8] sm:$0xff]
    %v991 = vld [vmem:[%s3 + $0xf0] sm:$0xff]
    %v992 = vld [vmem:[%s3 + $0xf8] sm:$0xff]
    %993 = vmatprep.subr.mxu0 0.0
    %994 = vmatpush1.msra.mxu0 %v961
    %995 = vmatprep.subr.mxu0 0.0
    %996 = vmatpush1.msra.mxu0 %v962
    %997 = vmatprep.subr.mxu0 0.0
    %998 = vmatpush1.msra.mxu0 %v963
    %999 = vmatprep.subr.mxu0 0.0
    %1000 = vmatpush1.msra.mxu0 %v964
    %1001 = vmatprep.subr.mxu0 0.0
    %1002 = vmatpush1.msra.mxu0 %v965
    %1003 = vmatprep.subr.mxu0 0.0
    %1004 = vmatpush1.msra.mxu0 %v966
    %1005 = vmatprep.subr.mxu0 0.0
    %1006 = vmatpush1.msra.mxu0 %v967
    %1007 = vmatprep.subr.mxu0 0.0
    %1008 = vmatpush1.msra.mxu0 %v968
    %1009 = vmatprep.subr.mxu0 0.0
    %1010 = vmatpush1.msra.mxu0 %v969
    %1011 = vmatprep.subr.mxu0 0.0
    %1012 = vmatpush1.msra.mxu0 %v970
    %1013 = vmatprep.subr.mxu0 0.0
    %1014 = vmatpush1.msra.mxu0 %v971
    %1015 = vmatprep.subr.mxu0 0.0
    %1016 = vmatpush1.msra.mxu0 %v972
    %1017 = vmatprep.subr.mxu0 0.0
    %1018 = vmatpush1.msra.mxu0 %v973
    %1019 = vmatprep.subr.mxu0 0.0
    %1020 = vmatpush1.msra.mxu0 %v974
    %1021 = vmatprep.subr.mxu0 0.0
    %1022 = vmatpush1.msra.mxu0 %v975
    %1023 = vmatprep.subr.mxu0 0.0
    %1024 = vmatpush1.msra.mxu0 %v976
    %1025 = vmatprep.subr.mxu0 0.0
    %1026 = vmatpush1.msra.mxu0 %v977
    %1027 = vmatprep.subr.mxu0 0.0
    %1028 = vmatpush1.msra.mxu0 %v978
    %1029 = vmatprep.subr.mxu0 0.0
    %1030 = vmatpush1.msra.mxu0 %v979
    %1031 = vmatprep.subr.mxu0 0.0
    %1032 = vmatpush1.msra.mxu0 %v980
    %1033 = vmatprep.subr.mxu0 0.0
    %1034 = vmatpush1.msra.mxu0 %v981
    %1035 = vmatprep.subr.mxu0 0.0
    %1036 = vmatpush1.msra.mxu0 %v982
    %1037 = vmatprep.subr.mxu0 0.0
    %1038 = vmatpush1.msra.mxu0 %v983
    %1039 = vmatprep.subr.mxu0 0.0
    %1040 = vmatpush1.msra.mxu0 %v984
    %1041 = vmatprep.subr.mxu0 0.0
    %1042 = vmatpush1.msra.mxu0 %v985
    %1043 = vmatprep.subr.mxu0 0.0
    %1044 = vmatpush1.msra.mxu0 %v986
    %1045 = vmatprep.subr.mxu0 0.0
    %1046 = vmatpush1.msra.mxu0 %v987
    %1047 = vmatprep.subr.mxu0 0.0
    %1048 = vmatpush1.msra.mxu0 %v988
    %1049 = vmatprep.subr.mxu0 0.0
    %1050 = vmatpush1.msra.mxu0 %v989
    %1051 = vmatprep.subr.mxu0 0.0
    %1052 = vmatpush1.msra.mxu0 %v990
    %1053 = vmatprep.subr.mxu0 0.0
    %1054 = vmatpush1.msra.mxu0 %v991
    %1055 = vmatprep.subr.mxu0 0.0
    %1056 = vmatpush1.msra.mxu0 %v992
    %1057 = vmatprep.mubr.f32.mxu0 %v40
    %1058 = vmatmul.mubr.f32.gmra.mrb[0].mxu0 %v39
    %v1059 = vpop.f32.mrb[0].mxu0
    %v1060 = vadd.f32 0.0, %v1059
    %v1061 = vpop.f32.mrb[0].mxu0
    %1062 = vdwg.mxu0
    %s1063 = scalar_lea.vmem %s9, 128
    %v1064 = vld [vmem:[%s1063] sm:$0xff]
    %v1065 = vld [vmem:[%s1063 + $0x8] sm:$0xff]
    %v1066 = vld [vmem:[%s1063 + $0x10] sm:$0xff]
    %v1067 = vld [vmem:[%s1063 + $0x18] sm:$0xff]
    %v1068 = vld [vmem:[%s1063 + $0x20] sm:$0xff]
    %v1069 = vld [vmem:[%s1063 + $0x28] sm:$0xff]
    %v1070 = vld [vmem:[%s1063 + $0x30] sm:$0xff]
    %v1071 = vld [vmem:[%s1063 + $0x38] sm:$0xff]
    %v1073 = vsel %vm160, %v1064, 0
    %v1076 = vsel %vm160, %v1065, 0
    %v1079 = vsel %vm160, %v1066, 0
    %v1082 = vsel %vm160, %v1067, 0
    %v1085 = vsel %vm160, %v1068, 0
    %v1088 = vsel %vm160, %v1069, 0
    %v1091 = vsel %vm160, %v1070, 0
    %v1094 = vsel %vm160, %v1071, 0
    %1096 = vmatprep.subr.mxu0 0.0
    %1097 = vmatpush1.msra.mxu0 %v1060
    %1098 = vmatprep.subr.mxu0 0.0
    %1099 = vmatpush1.msra.mxu0 0.0
    %1100 = vmatprep.subr.mxu0 0.0
    %1101 = vmatpush1.msra.mxu0 0.0
    %1102 = vmatprep.subr.mxu0 0.0
    %1103 = vmatpush1.msra.mxu0 0.0
    %1104 = vmatprep.subr.mxu0 0.0
    %1105 = vmatpush1.msra.mxu0 0.0
    %1106 = vmatprep.subr.mxu0 0.0
    %1107 = vmatpush1.msra.mxu0 0.0
    %1108 = vmatprep.subr.mxu0 0.0
    %1109 = vmatpush1.msra.mxu0 0.0
    %1110 = vmatprep.subr.mxu0 0.0
    %1111 = vmatpush1.msra.mxu0 0.0
    %1112 = vmatprep.subr.mxu0 0.0
    %1113 = vmatpush1.msra.mxu0 0.0
    %1114 = vmatprep.subr.mxu0 0.0
    %1115 = vmatpush1.msra.mxu0 0.0
    %1116 = vmatprep.subr.mxu0 0.0
    %1117 = vmatpush1.msra.mxu0 0.0
    %1118 = vmatprep.subr.mxu0 0.0
    %1119 = vmatpush1.msra.mxu0 0.0
    %1120 = vmatprep.subr.mxu0 0.0
    %1121 = vmatpush1.msra.mxu0 0.0
    %1122 = vmatprep.subr.mxu0 0.0
    %1123 = vmatpush1.msra.mxu0 0.0
    %1124 = vmatprep.subr.mxu0 0.0
    %1125 = vmatpush1.msra.mxu0 0.0
    %1126 = vmatprep.subr.mxu0 0.0
    %1127 = vmatpush1.msra.mxu0 0.0
    %1128 = vmatprep.subr.mxu0 0.0
    %1129 = vmatpush1.msra.mxu0 0.0
    %1130 = vmatprep.subr.mxu0 0.0
    %1131 = vmatpush1.msra.mxu0 0.0
    %1132 = vmatprep.subr.mxu0 0.0
    %1133 = vmatpush1.msra.mxu0 0.0
    %1134 = vmatprep.subr.mxu0 0.0
    %1135 = vmatpush1.msra.mxu0 0.0
    %1136 = vmatprep.subr.mxu0 0.0
    %1137 = vmatpush1.msra.mxu0 0.0
    %1138 = vmatprep.subr.mxu0 0.0
    %1139 = vmatpush1.msra.mxu0 0.0
    %1140 = vmatprep.subr.mxu0 0.0
    %1141 = vmatpush1.msra.mxu0 0.0
    %1142 = vmatprep.subr.mxu0 0.0
    %1143 = vmatpush1.msra.mxu0 0.0
    %1144 = vmatprep.subr.mxu0 0.0
    %1145 = vmatpush1.msra.mxu0 0.0
    %1146 = vmatprep.subr.mxu0 0.0
    %1147 = vmatpush1.msra.mxu0 0.0
    %1148 = vmatprep.subr.mxu0 0.0
    %1149 = vmatpush1.msra.mxu0 0.0
    %1150 = vmatprep.subr.mxu0 0.0
    %1151 = vmatpush1.msra.mxu0 0.0
    %1152 = vmatprep.subr.mxu0 0.0
    %1153 = vmatpush1.msra.mxu0 0.0
    %1154 = vmatprep.subr.mxu0 0.0
    %1155 = vmatpush1.msra.mxu0 0.0
    %1156 = vmatprep.subr.mxu0 0.0
    %1157 = vmatpush1.msra.mxu0 0.0
    %1158 = vmatprep.subr.mxu0 0.0
    %1159 = vmatpush1.msra.mxu0 0.0
    %1160 = vmatprep.mubr.f32.mxu0 0.0
    %1161 = vmatmul.mubr.f32.gmra.mrb[0].mxu0 %v1073
    %v1162 = vpop.f32.mrb[0].mxu0
    %v1163 = vadd.f32 0.0, %v1162
    %v1164 = vpop.f32.mrb[0].mxu0
    %1165 = vmatprep.mubr.f32.mxu0 0.0
    %1166 = vmatmul.mubr.f32.gmra.mrb[0].mxu0 %v1076
    %v1167 = vpop.f32.mrb[0].mxu0
    %v1168 = vadd.f32 0.0, %v1167
    %v1169 = vpop.f32.mrb[0].mxu0
    %1170 = vmatprep.mubr.f32.mxu0 0.0
    %1171 = vmatmul.mubr.f32.gmra.mrb[0].mxu0 %v1079
    %v1172 = vpop.f32.mrb[0].mxu0
    %v1173 = vadd.f32 0.0, %v1172
    %v1174 = vpop.f32.mrb[0].mxu0
    %1175 = vmatprep.mubr.f32.mxu0 0.0
    %1176 = vmatmul.mubr.f32.gmra.mrb[0].mxu0 %v1082
    %v1177 = vpop.f32.mrb[0].mxu0
    %v1178 = vadd.f32 0.0, %v1177
    %v1179 = vpop.f32.mrb[0].mxu0
    %1180 = vmatprep.mubr.f32.mxu0 0.0
    %1181 = vmatmul.mubr.f32.gmra.mrb[0].mxu0 %v1085
    %v1182 = vpop.f32.mrb[0].mxu0
    %v1183 = vadd.f32 0.0, %v1182
    %v1184 = vpop.f32.mrb[0].mxu0
    %1185 = vmatprep.mubr.f32.mxu0 0.0
    %1186 = vmatmul.mubr.f32.gmra.mrb[0].mxu0 %v1088
    %v1187 = vpop.f32.mrb[0].mxu0
    %v1188 = vadd.f32 0.0, %v1187
    %v1189 = vpop.f32.mrb[0].mxu0
    %1190 = vmatprep.mubr.f32.mxu0 0.0
    %1191 = vmatmul.mubr.f32.gmra.mrb[0].mxu0 %v1091
    %v1192 = vpop.f32.mrb[0].mxu0
    %v1193 = vadd.f32 0.0, %v1192
    %v1194 = vpop.f32.mrb[0].mxu0
    %1195 = vmatprep.mubr.f32.mxu0 0.0
    %1196 = vmatmul.mubr.f32.gmra.mrb[0].mxu0 %v1094
    %v1197 = vpop.f32.mrb[0].mxu0
    %v1198 = vadd.f32 0.0, %v1197
    %v1199 = vpop.f32.mrb[0].mxu0
    %1200 = vdwg.mxu0
    %v1201 = vld [vmem:[%s7] sm:$0xff]
    %v1202 = vld [vmem:[%s7 + $0x8] sm:$0xff]
    %v1203 = vld [vmem:[%s7 + $0x10] sm:$0xff]
    %v1204 = vld [vmem:[%s7 + $0x18] sm:$0xff]
    %vm1205 = vcmask 130048
    %v1207 = vsel %vm1205, %v1163, 0
    %v1210 = vsel %vm1205, %v1168, 0
    %v1213 = vsel %vm1205, %v1173, 0
    %v1216 = vsel %vm1205, %v1178, 0
    %v1219 = vsel %vm1205, %v1183, 0
    %v1222 = vsel %vm1205, %v1188, 0
    %v1225 = vsel %vm1205, %v1193, 0
    %v1228 = vsel %vm1205, %v1198, 0
    %1230 = vmatprep.subr.mxu0 %v1202
    %1231 = vmatpush1.msra.mxu0 %v1201
    %1232 = vmatprep.subr.mxu0 %v1204
    %1233 = vmatpush1.msra.mxu0 %v1203
    %1234 = vmatprep.subr.mxu0 0.0
    %1235 = vmatpush1.msra.mxu0 0.0
    %1236 = vmatprep.subr.mxu0 0.0
    %1237 = vmatpush1.msra.mxu0 0.0
    %1238 = vmatprep.subr.mxu0 0.0
    %1239 = vmatpush1.msra.mxu0 0.0
    %1240 = vmatprep.subr.mxu0 0.0
    %1241 = vmatpush1.msra.mxu0 0.0
    %1242 = vmatprep.subr.mxu0 0.0
    %1243 = vmatpush1.msra.mxu0 0.0
    %1244 = vmatprep.subr.mxu0 0.0
    %1245 = vmatpush1.msra.mxu0 0.0
    %1246 = vmatprep.subr.mxu0 0.0
    %1247 = vmatpush1.msra.mxu0 0.0
    %1248 = vmatprep.subr.mxu0 0.0
    %1249 = vmatpush1.msra.mxu0 0.0
    %1250 = vmatprep.subr.mxu0 0.0
    %1251 = vmatpush1.msra.mxu0 0.0
    %1252 = vmatprep.subr.mxu0 0.0
    %1253 = vmatpush1.msra.mxu0 0.0
    %1254 = vmatprep.subr.mxu0 0.0
    %1255 = vmatpush1.msra.mxu0 0.0
    %1256 = vmatprep.subr.mxu0 0.0
    %1257 = vmatpush1.msra.mxu0 0.0
    %1258 = vmatprep.subr.mxu0 0.0
    %1259 = vmatpush1.msra.mxu0 0.0
    %1260 = vmatprep.subr.mxu0 0.0
    %1261 = vmatpush1.msra.mxu0 0.0
    %1262 = vmatprep.subr.mxu0 0.0
    %1263 = vmatpush1.msra.mxu0 0.0
    %1264 = vmatprep.subr.mxu0 0.0
    %1265 = vmatpush1.msra.mxu0 0.0
    %1266 = vmatprep.subr.mxu0 0.0
    %1267 = vmatpush1.msra.mxu0 0.0
    %1268 = vmatprep.subr.mxu0 0.0
    %1269 = vmatpush1.msra.mxu0 0.0
    %1270 = vmatprep.subr.mxu0 0.0
    %1271 = vmatpush1.msra.mxu0 0.0
    %1272 = vmatprep.subr.mxu0 0.0
    %1273 = vmatpush1.msra.mxu0 0.0
    %1274 = vmatprep.subr.mxu0 0.0
    %1275 = vmatpush1.msra.mxu0 0.0
    %1276 = vmatprep.subr.mxu0 0.0
    %1277 = vmatpush1.msra.mxu0 0.0
    %1278 = vmatprep.subr.mxu0 0.0
    %1279 = vmatpush1.msra.mxu0 0.0
    %1280 = vmatprep.subr.mxu0 0.0
    %1281 = vmatpush1.msra.mxu0 0.0
    %1282 = vmatprep.subr.mxu0 0.0
    %1283 = vmatpush1.msra.mxu0 0.0
    %1284 = vmatprep.subr.mxu0 0.0
    %1285 = vmatpush1.msra.mxu0 0.0
    %1286 = vmatprep.subr.mxu0 0.0
    %1287 = vmatpush1.msra.mxu0 0.0
    %1288 = vmatprep.subr.mxu0 0.0
    %1289 = vmatpush1.msra.mxu0 0.0
    %1290 = vmatprep.subr.mxu0 0.0
    %1291 = vmatpush1.msra.mxu0 0.0
    %1292 = vmatprep.subr.mxu0 0.0
    %1293 = vmatpush1.msra.mxu0 0.0
    %1294 = vmatprep.mubr.f32.mxu0 0.0
    %1295 = vmatmul.mubr.f32.gmra.mrb[0].mxu0 %v1207
    %v1296 = vpop.f32.mrb[0].mxu0
    %v1297 = vadd.f32 0.0, %v1296
    %v1298 = vpop.f32.mrb[0].mxu0
    %v1299 = vadd.f32 0.0, %v1298
    %1300 = vmatprep.mubr.f32.mxu0 0.0
    %1301 = vmatmul.mubr.f32.gmra.mrb[0].mxu0 %v1210
    %v1302 = vpop.f32.mrb[0].mxu0
    %v1303 = vadd.f32 0.0, %v1302
    %v1304 = vpop.f32.mrb[0].mxu0
    %v1305 = vadd.f32 0.0, %v1304
    %1306 = vmatprep.mubr.f32.mxu0 0.0
    %1307 = vmatmul.mubr.f32.gmra.mrb[0].mxu0 %v1213
    %v1308 = vpop.f32.mrb[0].mxu0
    %v1309 = vadd.f32 0.0, %v1308
    %v1310 = vpop.f32.mrb[0].mxu0
    %v1311 = vadd.f32 0.0, %v1310
    %1312 = vmatprep.mubr.f32.mxu0 0.0
    %1313 = vmatmul.mubr.f32.gmra.mrb[0].mxu0 %v1216
    %v1314 = vpop.f32.mrb[0].mxu0
    %v1315 = vadd.f32 0.0, %v1314
    %v1316 = vpop.f32.mrb[0].mxu0
    %v1317 = vadd.f32 0.0, %v1316
    %1318 = vmatprep.mubr.f32.mxu0 0.0
    %1319 = vmatmul.mubr.f32.gmra.mrb[0].mxu0 %v1219
    %v1320 = vpop.f32.mrb[0].mxu0
    %v1321 = vadd.f32 0.0, %v1320
    %v1322 = vpop.f32.mrb[0].mxu0
    %v1323 = vadd.f32 0.0, %v1322
    %1324 = vmatprep.mubr.f32.mxu0 0.0
    %1325 = vmatmul.mubr.f32.gmra.mrb[0].mxu0 %v1222
    %v1326 = vpop.f32.mrb[0].mxu0
    %v1327 = vadd.f32 0.0, %v1326
    %v1328 = vpop.f32.mrb[0].mxu0
    %v1329 = vadd.f32 0.0, %v1328
    %1330 = vmatprep.mubr.f32.mxu0 0.0
    %1331 = vmatmul.mubr.f32.gmra.mrb[0].mxu0 %v1225
    %v1332 = vpop.f32.mrb[0].mxu0
    %v1333 = vadd.f32 0.0, %v1332
    %v1334 = vpop.f32.mrb[0].mxu0
    %v1335 = vadd.f32 0.0, %v1334
    %1336 = vmatprep.mubr.f32.mxu0 0.0
    %1337 = vmatmul.mubr.f32.gmra.mrb[0].mxu0 %v1228
    %v1338 = vpop.f32.mrb[0].mxu0
    %v1339 = vadd.f32 0.0, %v1338
    %v1340 = vpop.f32.mrb[0].mxu0
    %v1341 = vadd.f32 0.0, %v1340
    %1342 = vdwg.mxu0
    %v1343 = vadd.f32 %v945, %v1297
    %v1344 = vadd.f32 %v946, %v1299
    %v1345 = vadd.f32 %v947, %v1303
    %v1346 = vadd.f32 %v948, %v1305
    %v1347 = vadd.f32 %v949, %v1309
    %v1348 = vadd.f32 %v950, %v1311
    %v1349 = vadd.f32 %v951, %v1315
    %v1350 = vadd.f32 %v952, %v1317
    %v1351 = vadd.f32 %v953, %v1321
    %v1352 = vadd.f32 %v954, %v1323
    %v1353 = vadd.f32 %v955, %v1327
    %v1354 = vadd.f32 %v956, %v1329
    %v1355 = vadd.f32 %v957, %v1333
    %v1356 = vadd.f32 %v958, %v1335
    %v1357 = vadd.f32 %v959, %v1339
    %v1358 = vadd.f32 %v960, %v1341
    %v1359 = vld [vmem:[%s4] sm:$0xff]
    %v1360 = vld [vmem:[%s4 + $0x8] sm:$0xff]
    %v1361 = vld [vmem:[%s4 + $0x10] sm:$0xff]
    %v1362 = vld [vmem:[%s4 + $0x18] sm:$0xff]
    %v1363 = vld [vmem:[%s4 + $0x20] sm:$0xff]
    %v1364 = vld [vmem:[%s4 + $0x28] sm:$0xff]
    %v1365 = vld [vmem:[%s4 + $0x30] sm:$0xff]
    %v1366 = vld [vmem:[%s4 + $0x38] sm:$0xff]
    %v1367 = vld [vmem:[%s4 + $0x40] sm:$0xff]
    %v1368 = vld [vmem:[%s4 + $0x48] sm:$0xff]
    %v1369 = vld [vmem:[%s4 + $0x50] sm:$0xff]
    %v1370 = vld [vmem:[%s4 + $0x58] sm:$0xff]
    %v1371 = vld [vmem:[%s4 + $0x60] sm:$0xff]
    %v1372 = vld [vmem:[%s4 + $0x68] sm:$0xff]
    %v1373 = vld [vmem:[%s4 + $0x70] sm:$0xff]
    %v1374 = vld [vmem:[%s4 + $0x78] sm:$0xff]
    %v1375 = vld [vmem:[%s4 + $0x80] sm:$0xff]
    %v1376 = vld [vmem:[%s4 + $0x88] sm:$0xff]
    %v1377 = vld [vmem:[%s4 + $0x90] sm:$0xff]
    %v1378 = vld [vmem:[%s4 + $0x98] sm:$0xff]
    %v1379 = vld [vmem:[%s4 + $0xa0] sm:$0xff]
    %v1380 = vld [vmem:[%s4 + $0xa8] sm:$0xff]
    %v1381 = vld [vmem:[%s4 + $0xb0] sm:$0xff]
    %v1382 = vld [vmem:[%s4 + $0xb8] sm:$0xff]
    %v1383 = vld [vmem:[%s4 + $0xc0] sm:$0xff]
    %v1384 = vld [vmem:[%s4 + $0xc8] sm:$0xff]
    %v1385 = vld [vmem:[%s4 + $0xd0] sm:$0xff]
    %v1386 = vld [vmem:[%s4 + $0xd8] sm:$0xff]
    %v1387 = vld [vmem:[%s4 + $0xe0] sm:$0xff]
    %v1388 = vld [vmem:[%s4 + $0xe8] sm:$0xff]
    %v1389 = vld [vmem:[%s4 + $0xf0] sm:$0xff]
    %v1390 = vld [vmem:[%s4 + $0xf8] sm:$0xff]
    %1391 = vmatprep.subr.mxu0 0.0
    %1392 = vmatpush1.msra.mxu0 %v1359
    %1393 = vmatprep.subr.mxu0 0.0
    %1394 = vmatpush1.msra.mxu0 %v1360
    %1395 = vmatprep.subr.mxu0 0.0
    %1396 = vmatpush1.msra.mxu0 %v1361
    %1397 = vmatprep.subr.mxu0 0.0
    %1398 = vmatpush1.msra.mxu0 %v1362
    %1399 = vmatprep.subr.mxu0 0.0
    %1400 = vmatpush1.msra.mxu0 %v1363
    %1401 = vmatprep.subr.mxu0 0.0
    %1402 = vmatpush1.msra.mxu0 %v1364
    %1403 = vmatprep.subr.mxu0 0.0
    %1404 = vmatpush1.msra.mxu0 %v1365
    %1405 = vmatprep.subr.mxu0 0.0
    %1406 = vmatpush1.msra.mxu0 %v1366
    %1407 = vmatprep.subr.mxu0 0.0
    %1408 = vmatpush1.msra.mxu0 %v1367
    %1409 = vmatprep.subr.mxu0 0.0
    %1410 = vmatpush1.msra.mxu0 %v1368
    %1411 = vmatprep.subr.mxu0 0.0
    %1412 = vmatpush1.msra.mxu0 %v1369
    %1413 = vmatprep.subr.mxu0 0.0
    %1414 = vmatpush1.msra.mxu0 %v1370
    %1415 = vmatprep.subr.mxu0 0.0
    %1416 = vmatpush1.msra.mxu0 %v1371
    %1417 = vmatprep.subr.mxu0 0.0
    %1418 = vmatpush1.msra.mxu0 %v1372
    %1419 = vmatprep.subr.mxu0 0.0
    %1420 = vmatpush1.msra.mxu0 %v1373
    %1421 = vmatprep.subr.mxu0 0.0
    %1422 = vmatpush1.msra.mxu0 %v1374
    %1423 = vmatprep.subr.mxu0 0.0
    %1424 = vmatpush1.msra.mxu0 %v1375
    %1425 = vmatprep.subr.mxu0 0.0
    %1426 = vmatpush1.msra.mxu0 %v1376
    %1427 = vmatprep.subr.mxu0 0.0
    %1428 = vmatpush1.msra.mxu0 %v1377
    %1429 = vmatprep.subr.mxu0 0.0
    %1430 = vmatpush1.msra.mxu0 %v1378
    %1431 = vmatprep.subr.mxu0 0.0
    %1432 = vmatpush1.msra.mxu0 %v1379
    %1433 = vmatprep.subr.mxu0 0.0
    %1434 = vmatpush1.msra.mxu0 %v1380
    %1435 = vmatprep.subr.mxu0 0.0
    %1436 = vmatpush1.msra.mxu0 %v1381
    %1437 = vmatprep.subr.mxu0 0.0
    %1438 = vmatpush1.msra.mxu0 %v1382
    %1439 = vmatprep.subr.mxu0 0.0
    %1440 = vmatpush1.msra.mxu0 %v1383
    %1441 = vmatprep.subr.mxu0 0.0
    %1442 = vmatpush1.msra.mxu0 %v1384
    %1443 = vmatprep.subr.mxu0 0.0
    %1444 = vmatpush1.msra.mxu0 %v1385
    %1445 = vmatprep.subr.mxu0 0.0
    %1446 = vmatpush1.msra.mxu0 %v1386
    %1447 = vmatprep.subr.mxu0 0.0
    %1448 = vmatpush1.msra.mxu0 %v1387
    %1449 = vmatprep.subr.mxu0 0.0
    %1450 = vmatpush1.msra.mxu0 %v1388
    %1451 = vmatprep.subr.mxu0 0.0
    %1452 = vmatpush1.msra.mxu0 %v1389
    %1453 = vmatprep.subr.mxu0 0.0
    %1454 = vmatpush1.msra.mxu0 %v1390
    %1455 = vmatprep.mubr.f32.mxu0 %v40
    %1456 = vmatmul.mubr.f32.gmra.mrb[0].mxu0 %v39
    %v1457 = vpop.f32.mrb[0].mxu0
    %v1458 = vadd.f32 0.0, %v1457
    %v1459 = vpop.f32.mrb[0].mxu0
    %1460 = vdwg.mxu0
    %s1461 = scalar_lea.vmem %s9, 192
    %v1462 = vld [vmem:[%s1461] sm:$0xff]
    %v1463 = vld [vmem:[%s1461 + $0x8] sm:$0xff]
    %v1464 = vld [vmem:[%s1461 + $0x10] sm:$0xff]
    %v1465 = vld [vmem:[%s1461 + $0x18] sm:$0xff]
    %v1466 = vld [vmem:[%s1461 + $0x20] sm:$0xff]
    %v1467 = vld [vmem:[%s1461 + $0x28] sm:$0xff]
    %v1468 = vld [vmem:[%s1461 + $0x30] sm:$0xff]
    %v1469 = vld [vmem:[%s1461 + $0x38] sm:$0xff]
    %v1471 = vsel %vm160, %v1462, 0
    %v1474 = vsel %vm160, %v1463, 0
    %v1477 = vsel %vm160, %v1464, 0
    %v1480 = vsel %vm160, %v1465, 0
    %v1483 = vsel %vm160, %v1466, 0
    %v1486 = vsel %vm160, %v1467, 0
    %v1489 = vsel %vm160, %v1468, 0
    %v1492 = vsel %vm160, %v1469, 0
    %1494 = vmatprep.subr.mxu0 0.0
    %1495 = vmatpush1.msra.mxu0 %v1458
    %1496 = vmatprep.subr.mxu0 0.0
    %1497 = vmatpush1.msra.mxu0 0.0
    %1498 = vmatprep.subr.mxu0 0.0
    %1499 = vmatpush1.msra.mxu0 0.0
    %1500 = vmatprep.subr.mxu0 0.0
    %1501 = vmatpush1.msra.mxu0 0.0
    %1502 = vmatprep.subr.mxu0 0.0
    %1503 = vmatpush1.msra.mxu0 0.0
    %1504 = vmatprep.subr.mxu0 0.0
    %1505 = vmatpush1.msra.mxu0 0.0
    %1506 = vmatprep.subr.mxu0 0.0
    %1507 = vmatpush1.msra.mxu0 0.0
    %1508 = vmatprep.subr.mxu0 0.0
    %1509 = vmatpush1.msra.mxu0 0.0
    %1510 = vmatprep.subr.mxu0 0.0
    %1511 = vmatpush1.msra.mxu0 0.0
    %1512 = vmatprep.subr.mxu0 0.0
    %1513 = vmatpush1.msra.mxu0 0.0
    %1514 = vmatprep.subr.mxu0 0.0
    %1515 = vmatpush1.msra.mxu0 0.0
    %1516 = vmatprep.subr.mxu0 0.0
    %1517 = vmatpush1.msra.mxu0 0.0
    %1518 = vmatprep.subr.mxu0 0.0
    %1519 = vmatpush1.msra.mxu0 0.0
    %1520 = vmatprep.subr.mxu0 0.0
    %1521 = vmatpush1.msra.mxu0 0.0
    %1522 = vmatprep.subr.mxu0 0.0
    %1523 = vmatpush1.msra.mxu0 0.0
    %1524 = vmatprep.subr.mxu0 0.0
    %1525 = vmatpush1.msra.mxu0 0.0
    %1526 = vmatprep.subr.mxu0 0.0
    %1527 = vmatpush1.msra.mxu0 0.0
    %1528 = vmatprep.subr.mxu0 0.0
    %1529 = vmatpush1.msra.mxu0 0.0
    %1530 = vmatprep.subr.mxu0 0.0
    %1531 = vmatpush1.msra.mxu0 0.0
    %1532 = vmatprep.subr.mxu0 0.0
    %1533 = vmatpush1.msra.mxu0 0.0
    %1534 = vmatprep.subr.mxu0 0.0
    %1535 = vmatpush1.msra.mxu0 0.0
    %1536 = vmatprep.subr.mxu0 0.0
    %1537 = vmatpush1.msra.mxu0 0.0
    %1538 = vmatprep.subr.mxu0 0.0
    %1539 = vmatpush1.msra.mxu0 0.0
    %1540 = vmatprep.subr.mxu0 0.0
    %1541 = vmatpush1.msra.mxu0 0.0
    %1542 = vmatprep.subr.mxu0 0.0
    %1543 = vmatpush1.msra.mxu0 0.0
    %1544 = vmatprep.subr.mxu0 0.0
    %1545 = vmatpush1.msra.mxu0 0.0
    %1546 = vmatprep.subr.mxu0 0.0
    %1547 = vmatpush1.msra.mxu0 0.0
    %1548 = vmatprep.subr.mxu0 0.0
    %1549 = vmatpush1.msra.mxu0 0.0
    %1550 = vmatprep.subr.mxu0 0.0
    %1551 = vmatpush1.msra.mxu0 0.0
    %1552 = vmatprep.subr.mxu0 0.0
    %1553 = vmatpush1.msra.mxu0 0.0
    %1554 = vmatprep.subr.mxu0 0.0
    %1555 = vmatpush1.msra.mxu0 0.0
    %1556 = vmatprep.subr.mxu0 0.0
    %1557 = vmatpush1.msra.mxu0 0.0
    %1558 = vmatprep.mubr.f32.mxu0 0.0
    %1559 = vmatmul.mubr.f32.gmra.mrb[0].mxu0 %v1471
    %v1560 = vpop.f32.mrb[0].mxu0
    %v1561 = vadd.f32 0.0, %v1560
    %v1562 = vpop.f32.mrb[0].mxu0
    %1563 = vmatprep.mubr.f32.mxu0 0.0
    %1564 = vmatmul.mubr.f32.gmra.mrb[0].mxu0 %v1474
    %v1565 = vpop.f32.mrb[0].mxu0
    %v1566 = vadd.f32 0.0, %v1565
    %v1567 = vpop.f32.mrb[0].mxu0
    %1568 = vmatprep.mubr.f32.mxu0 0.0
    %1569 = vmatmul.mubr.f32.gmra.mrb[0].mxu0 %v1477
    %v1570 = vpop.f32.mrb[0].mxu0
    %v1571 = vadd.f32 0.0, %v1570
    %v1572 = vpop.f32.mrb[0].mxu0
    %1573 = vmatprep.mubr.f32.mxu0 0.0
    %1574 = vmatmul.mubr.f32.gmra.mrb[0].mxu0 %v1480
    %v1575 = vpop.f32.mrb[0].mxu0
    %v1576 = vadd.f32 0.0, %v1575
    %v1577 = vpop.f32.mrb[0].mxu0
    %1578 = vmatprep.mubr.f32.mxu0 0.0
    %1579 = vmatmul.mubr.f32.gmra.mrb[0].mxu0 %v1483
    %v1580 = vpop.f32.mrb[0].mxu0
    %v1581 = vadd.f32 0.0, %v1580
    %v1582 = vpop.f32.mrb[0].mxu0
    %1583 = vmatprep.mubr.f32.mxu0 0.0
    %1584 = vmatmul.mubr.f32.gmra.mrb[0].mxu0 %v1486
    %v1585 = vpop.f32.mrb[0].mxu0
    %v1586 = vadd.f32 0.0, %v1585
    %v1587 = vpop.f32.mrb[0].mxu0
    %1588 = vmatprep.mubr.f32.mxu0 0.0
    %1589 = vmatmul.mubr.f32.gmra.mrb[0].mxu0 %v1489
    %v1590 = vpop.f32.mrb[0].mxu0
    %v1591 = vadd.f32 0.0, %v1590
    %v1592 = vpop.f32.mrb[0].mxu0
    %1593 = vmatprep.mubr.f32.mxu0 0.0
    %1594 = vmatmul.mubr.f32.gmra.mrb[0].mxu0 %v1492
    %v1595 = vpop.f32.mrb[0].mxu0
    %v1596 = vadd.f32 0.0, %v1595
    %v1597 = vpop.f32.mrb[0].mxu0
    %1598 = vdwg.mxu0
    %v1599 = vld [vmem:[%s8] sm:$0xff]
    %v1600 = vld [vmem:[%s8 + $0x8] sm:$0xff]
    %v1601 = vld [vmem:[%s8 + $0x10] sm:$0xff]
    %v1602 = vld [vmem:[%s8 + $0x18] sm:$0xff]
    %v1603 = vld [vmem:[%s8 + $0x20] sm:$0xff]
    %v1604 = vld [vmem:[%s8 + $0x28] sm:$0xff]
    %v1605 = vld [vmem:[%s8 + $0x30] sm:$0xff]
    %v1606 = vld [vmem:[%s8 + $0x38] sm:$0xff]
    %v1607 = vld [vmem:[%s8 + $0x40] sm:$0xff]
    %v1608 = vld [vmem:[%s8 + $0x48] sm:$0xff]
    %vm1609 = vcmask 326656
    %v1611 = vsel %vm1609, %v1561, 0
    %v1614 = vsel %vm1609, %v1566, 0
    %v1617 = vsel %vm1609, %v1571, 0
    %v1620 = vsel %vm1609, %v1576, 0
    %v1623 = vsel %vm1609, %v1581, 0
    %v1626 = vsel %vm1609, %v1586, 0
    %v1629 = vsel %vm1609, %v1591, 0
    %v1632 = vsel %vm1609, %v1596, 0
    %1634 = vmatprep.subr.mxu0 %v1600
    %1635 = vmatpush1.msra.mxu0 %v1599
    %1636 = vmatprep.subr.mxu0 %v1602
    %1637 = vmatpush1.msra.mxu0 %v1601
    %1638 = vmatprep.subr.mxu0 %v1604
    %1639 = vmatpush1.msra.mxu0 %v1603
    %1640 = vmatprep.subr.mxu0 %v1606
    %1641 = vmatpush1.msra.mxu0 %v1605
    %1642 = vmatprep.subr.mxu0 %v1608
    %1643 = vmatpush1.msra.mxu0 %v1607
    %1644 = vmatprep.subr.mxu0 0.0
    %1645 = vmatpush1.msra.mxu0 0.0
    %1646 = vmatprep.subr.mxu0 0.0
    %1647 = vmatpush1.msra.mxu0 0.0
    %1648 = vmatprep.subr.mxu0 0.0
    %1649 = vmatpush1.msra.mxu0 0.0
    %1650 = vmatprep.subr.mxu0 0.0
    %1651 = vmatpush1.msra.mxu0 0.0
    %1652 = vmatprep.subr.mxu0 0.0
    %1653 = vmatpush1.msra.mxu0 0.0
    %1654 = vmatprep.subr.mxu0 0.0
    %1655 = vmatpush1.msra.mxu0 0.0
    %1656 = vmatprep.subr.mxu0 0.0
    %1657 = vmatpush1.msra.mxu0 0.0
    %1658 = vmatprep.subr.mxu0 0.0
    %1659 = vmatpush1.msra.mxu0 0.0
    %1660 = vmatprep.subr.mxu0 0.0
    %1661 = vmatpush1.msra.mxu0 0.0
    %1662 = vmatprep.subr.mxu0 0.0
    %1663 = vmatpush1.msra.mxu0 0.0
    %1664 = vmatprep.subr.mxu0 0.0
    %1665 = vmatpush1.msra.mxu0 0.0
    %1666 = vmatprep.subr.mxu0 0.0
    %1667 = vmatpush1.msra.mxu0 0.0
    %1668 = vmatprep.subr.mxu0 0.0
    %1669 = vmatpush1.msra.mxu0 0.0
    %1670 = vmatprep.subr.mxu0 0.0
    %1671 = vmatpush1.msra.mxu0 0.0
    %1672 = vmatprep.subr.mxu0 0.0
    %1673 = vmatpush1.msra.mxu0 0.0
    %1674 = vmatprep.subr.mxu0 0.0
    %1675 = vmatpush1.msra.mxu0 0.0
    %1676 = vmatprep.subr.mxu0 0.0
    %1677 = vmatpush1.msra.mxu0 0.0
    %1678 = vmatprep.subr.mxu0 0.0
    %1679 = vmatpush1.msra.mxu0 0.0
    %1680 = vmatprep.subr.mxu0 0.0
    %1681 = vmatpush1.msra.mxu0 0.0
    %1682 = vmatprep.subr.mxu0 0.0
    %1683 = vmatpush1.msra.mxu0 0.0
    %1684 = vmatprep.subr.mxu0 0.0
    %1685 = vmatpush1.msra.mxu0 0.0
    %1686 = vmatprep.subr.mxu0 0.0
    %1687 = vmatpush1.msra.mxu0 0.0
    %1688 = vmatprep.subr.mxu0 0.0
    %1689 = vmatpush1.msra.mxu0 0.0
    %1690 = vmatprep.subr.mxu0 0.0
    %1691 = vmatpush1.msra.mxu0 0.0
    %1692 = vmatprep.subr.mxu0 0.0
    %1693 = vmatpush1.msra.mxu0 0.0
    %1694 = vmatprep.subr.mxu0 0.0
    %1695 = vmatpush1.msra.mxu0 0.0
    %1696 = vmatprep.subr.mxu0 0.0
    %1697 = vmatpush1.msra.mxu0 0.0
    %1698 = vmatprep.mubr.f32.mxu0 0.0
    %1699 = vmatmul.mubr.f32.gmra.mrb[0].mxu0 %v1611
    %v1700 = vpop.f32.mrb[0].mxu0
    %v1701 = vadd.f32 0.0, %v1700
    %v1702 = vpop.f32.mrb[0].mxu0
    %v1703 = vadd.f32 0.0, %v1702
    %1704 = vmatprep.mubr.f32.mxu0 0.0
    %1705 = vmatmul.mubr.f32.gmra.mrb[0].mxu0 %v1614
    %v1706 = vpop.f32.mrb[0].mxu0
    %v1707 = vadd.f32 0.0, %v1706
    %v1708 = vpop.f32.mrb[0].mxu0
    %v1709 = vadd.f32 0.0, %v1708
    %1710 = vmatprep.mubr.f32.mxu0 0.0
    %1711 = vmatmul.mubr.f32.gmra.mrb[0].mxu0 %v1617
    %v1712 = vpop.f32.mrb[0].mxu0
    %v1713 = vadd.f32 0.0, %v1712
    %v1714 = vpop.f32.mrb[0].mxu0
    %v1715 = vadd.f32 0.0, %v1714
    %1716 = vmatprep.mubr.f32.mxu0 0.0
    %1717 = vmatmul.mubr.f32.gmra.mrb[0].mxu0 %v1620
    %v1718 = vpop.f32.mrb[0].mxu0
    %v1719 = vadd.f32 0.0, %v1718
    %v1720 = vpop.f32.mrb[0].mxu0
    %v1721 = vadd.f32 0.0, %v1720
    %1722 = vmatprep.mubr.f32.mxu0 0.0
    %1723 = vmatmul.mubr.f32.gmra.mrb[0].mxu0 %v1623
    %v1724 = vpop.f32.mrb[0].mxu0
    %v1725 = vadd.f32 0.0, %v1724
    %v1726 = vpop.f32.mrb[0].mxu0
    %v1727 = vadd.f32 0.0, %v1726
    %1728 = vmatprep.mubr.f32.mxu0 0.0
    %1729 = vmatmul.mubr.f32.gmra.mrb[0].mxu0 %v1626
    %v1730 = vpop.f32.mrb[0].mxu0
    %v1731 = vadd.f32 0.0, %v1730
    %v1732 = vpop.f32.mrb[0].mxu0
    %v1733 = vadd.f32 0.0, %v1732
    %1734 = vmatprep.mubr.f32.mxu0 0.0
    %1735 = vmatmul.mubr.f32.gmra.mrb[0].mxu0 %v1629
    %v1736 = vpop.f32.mrb[0].mxu0
    %v1737 = vadd.f32 0.0, %v1736
    %v1738 = vpop.f32.mrb[0].mxu0
    %v1739 = vadd.f32 0.0, %v1738
    %1740 = vmatprep.mubr.f32.mxu0 0.0
    %1741 = vmatmul.mubr.f32.gmra.mrb[0].mxu0 %v1632
    %v1742 = vpop.f32.mrb[0].mxu0
    %v1743 = vadd.f32 0.0, %v1742
    %v1744 = vpop.f32.mrb[0].mxu0
    %v1745 = vadd.f32 0.0, %v1744
    %1746 = vdwg.mxu0
    %v1747 = vadd.f32 %v1343, %v1701
    %v1748 = vadd.f32 %v1344, %v1703
    %v1749 = vadd.f32 %v1345, %v1707
    %v1750 = vadd.f32 %v1346, %v1709
    %v1751 = vadd.f32 %v1347, %v1713
    %v1752 = vadd.f32 %v1348, %v1715
    %v1753 = vadd.f32 %v1349, %v1719
    %v1754 = vadd.f32 %v1350, %v1721
    %v1755 = vadd.f32 %v1351, %v1725
    %v1756 = vadd.f32 %v1352, %v1727
    %v1757 = vadd.f32 %v1353, %v1731
    %v1758 = vadd.f32 %v1354, %v1733
    %v1759 = vadd.f32 %v1355, %v1737
    %v1760 = vadd.f32 %v1356, %v1739
    %v1761 = vadd.f32 %v1357, %v1743
    %v1762 = vadd.f32 %v1358, %v1745
    %v1763 = vld [vmem:[%s10] sm:$0xff]
    %v1764 = vld [vmem:[%s10 + $0x8] sm:$0xff]
    %v1765 = vld [vmem:[%s10 + $0x10] sm:$0xff]
    %v1766 = vld [vmem:[%s10 + $0x18] sm:$0xff]
    %v1767 = vld [vmem:[%s10 + $0x20] sm:$0xff]
    %v1768 = vld [vmem:[%s10 + $0x28] sm:$0xff]
    %v1769 = vld [vmem:[%s10 + $0x30] sm:$0xff]
    %v1770 = vld [vmem:[%s10 + $0x38] sm:$0xff]
    %1772 = vset.pattern.permute.xlu0 0
    %1773 = vperm.xlu0 %1772, %v1763
    %v1774 = vpop.permute.xlu0 %1773
    %1777 = vset.pattern.permute.xlu0 0
    %1778 = vperm.xlu0 %1777, %v1764
    %v1779 = vpop.permute.xlu0 %1778
    %1782 = vset.pattern.permute.xlu0 0
    %1783 = vperm.xlu0 %1782, %v1765
    %v1784 = vpop.permute.xlu0 %1783
    %1787 = vset.pattern.permute.xlu0 0
    %1788 = vperm.xlu0 %1787, %v1766
    %v1789 = vpop.permute.xlu0 %1788
    %1792 = vset.pattern.permute.xlu0 0
    %1793 = vperm.xlu0 %1792, %v1767
    %v1794 = vpop.permute.xlu0 %1793
    %1797 = vset.pattern.permute.xlu0 0
    %1798 = vperm.xlu0 %1797, %v1768
    %v1799 = vpop.permute.xlu0 %1798
    %1802 = vset.pattern.permute.xlu0 0
    %1803 = vperm.xlu0 %1802, %v1769
    %v1804 = vpop.permute.xlu0 %1803
    %1807 = vset.pattern.permute.xlu0 0
    %1808 = vperm.xlu0 %1807, %v1770
    %v1809 = vpop.permute.xlu0 %1808
    %v1811 = vadd.f32 %v1747, %v1774
    %v1812 = vadd.f32 %v1748, %v1774
    %v1813 = vadd.f32 %v1749, %v1779
    %v1814 = vadd.f32 %v1750, %v1779
    %v1815 = vadd.f32 %v1751, %v1784
    %v1816 = vadd.f32 %v1752, %v1784
    %v1817 = vadd.f32 %v1753, %v1789
    %v1818 = vadd.f32 %v1754, %v1789
    %v1819 = vadd.f32 %v1755, %v1794
    %v1820 = vadd.f32 %v1756, %v1794
    %v1821 = vadd.f32 %v1757, %v1799
    %v1822 = vadd.f32 %v1758, %v1799
    %v1823 = vadd.f32 %v1759, %v1804
    %v1824 = vadd.f32 %v1760, %v1804
    %v1825 = vadd.f32 %v1761, %v1809
    %v1826 = vadd.f32 %v1762, %v1809
    %v1827 = vmax.f32 %v1811, 0.0
    %v1828 = vmax.f32 %v1812, 0.0
    %v1829 = vmax.f32 %v1813, 0.0
    %v1830 = vmax.f32 %v1814, 0.0
    %v1831 = vmax.f32 %v1815, 0.0
    %v1832 = vmax.f32 %v1816, 0.0
    %v1833 = vmax.f32 %v1817, 0.0
    %v1834 = vmax.f32 %v1818, 0.0
    %v1835 = vmax.f32 %v1819, 0.0
    %v1836 = vmax.f32 %v1820, 0.0
    %v1837 = vmax.f32 %v1821, 0.0
    %v1838 = vmax.f32 %v1822, 0.0
    %v1839 = vmax.f32 %v1823, 0.0
    %v1840 = vmax.f32 %v1824, 0.0
    %v1841 = vmax.f32 %v1825, 0.0
    %v1842 = vmax.f32 %v1826, 0.0
    %1843 = vst [vmem:[#allocation2] sm:$0xff] %v1827
    %1844 = vst [vmem:[#allocation2 + $0x8] sm:$0xff] %v1828
    %1845 = vst [vmem:[#allocation2 + $0x10] sm:$0xff] %v1829
    %1846 = vst [vmem:[#allocation2 + $0x18] sm:$0xff] %v1830
    %1847 = vst [vmem:[#allocation2 + $0x20] sm:$0xff] %v1831
    %1848 = vst [vmem:[#allocation2 + $0x28] sm:$0xff] %v1832
    %1849 = vst [vmem:[#allocation2 + $0x30] sm:$0xff] %v1833
    %1850 = vst [vmem:[#allocation2 + $0x38] sm:$0xff] %v1834
    %1851 = vst [vmem:[#allocation2 + $0x40] sm:$0xff] %v1835
    %1852 = vst [vmem:[#allocation2 + $0x48] sm:$0xff] %v1836
    %1853 = vst [vmem:[#allocation2 + $0x50] sm:$0xff] %v1837
    %1854 = vst [vmem:[#allocation2 + $0x58] sm:$0xff] %v1838
    %1855 = vst [vmem:[#allocation2 + $0x60] sm:$0xff] %v1839
    %1856 = vst [vmem:[#allocation2 + $0x68] sm:$0xff] %v1840
    %1857 = vst [vmem:[#allocation2 + $0x70] sm:$0xff] %v1841
    %1858 = vst [vmem:[#allocation2 + $0x78] sm:$0xff] %v1842
    // Predicated region
    $region46: #{tpu_custom_call.1} parent=1 // pred_check
      _
    $region47: #{tpu_custom_call.1} parent=1 // pred_check_branch
      %1860 = sbr.rel (0) target = $region49
    $region48: #{tpu_custom_call.1} parent=1 // pred_region
      %s1862 = ssub.s32 2048, 2048
      %1863 = vsyncadd [#allocation3], %s1862
      %s1864 = sshll.u32 [#allocation2], 4
      %s1865 = int_to_ptr.vmem [resolvable:$true] %s1864
      %1870 = dma.vmem_to_hbm [thread:$0]  %s1865, 2048, %s11, [#allocation3], 256, 256, 16
    $region49: #{tpu_custom_call.1} parent=1 // pred_fallthru
      _
    // Predicated region
    $region50: #{tpu_custom_call.1} parent=1 // pred_check
      _
    $region51: #{tpu_custom_call.1} parent=1 // pred_check_branch
      %1872 = sbr.rel (0) target = $region53
    $region52: #{tpu_custom_call.1} parent=1 // pred_region
      %1873 = dma.done [#allocation3], 2048
    $region53: #{tpu_custom_call.1} parent=1 // pred_fallthru
      _
    %1874 = vsyncpa [#allocation3], 1

</llo_original>
